<compile_context>
chip_gen: v6e
topology: v6e:2x2x1
jax: 0.10.0
libtpu: 0.0.40
codegen_flags: <defaults>
</compile_context>

<pallas_src>
import jax
import jax.numpy as jnp
from jax.experimental import pallas as pl
from jax.experimental.pallas import tpu as pltpu

NEG_SLOPE = 0.01
BN_EPS = 1e-5
LANE = 128


def _classifier_kernel(x_ref, w_ref, p_ref, out_ref):
    """x_ref: [N, P] bf16, w_ref: [5, P, P] bf16, p_ref: [16, P] f32, out: [N, P] f32.

    p_ref row layout:
        0..4   biases   (encoder, fc1..fc4)
        5..8   BN gamma (bn1..bn4)
        9..12  BN beta  (bn1..bn4)
        13..15 zero padding (sublane alignment)
    """
    n = x_ref.shape[0]
    inv_n = jnp.float32(1.0 / n)  # static batch size -> compile-time constant

    def row(i):  # static (1, P) parameter row
        return p_ref[pl.ds(i, 1), :]

    def linear(h_bf16, layer):
        # bf16 operands on the MXU, f32 accumulation; bias added in f32.
        acc = jnp.dot(h_bf16, w_ref[layer], preferred_element_type=jnp.float32)
        return acc + row(layer)

    def leaky_relu(h):
        return jnp.maximum(h, NEG_SLOPE * h)

    def batch_norm(h, i):
        # Training-mode BatchNorm1d, single-pass folded affine:
        # both reductions are independent (issue in parallel), the normalize
        # step is one mul + one add per element.
        s1 = jnp.sum(h, axis=0, keepdims=True)          # [1, P]
        s2 = jnp.sum(h * h, axis=0, keepdims=True)       # [1, P]
        mean = s1 * inv_n
        var = jnp.maximum(s2 * inv_n - mean * mean, 0.0)  # guard f32 cancellation
        scale = jax.lax.rsqrt(var + BN_EPS) * row(5 + i)  # [1, P] folded scale
        shift = row(9 + i) - mean * scale                 # [1, P] folded shift
        return h * scale + shift

    # encoder (synthetic stand-in): Linear + LeakyReLU -> latent code
    h = leaky_relu(linear(x_ref[...], 0))

    # classifier head: 4 x (Linear -> LeakyReLU -> BatchNorm1d)
    for layer in range(1, 5):
        h = batch_norm(leaky_relu(linear(h.astype(jnp.bfloat16), layer)),
                       layer - 1)

    out_ref[...] = h


def _round_up(v, m):
    return (v + m - 1) // m * m


def classifier_forward(x, params):
    """x: [N, D_in] float32.  params: dict of f32 weights (see init_params)."""
    n, d_in = x.shape
    num_classes = params["w4"].shape[1]

    # Common padded feature width (all layer dims here are <= 128).
    dims = [d_in, params["we"].shape[1], params["w1"].shape[1],
            params["w2"].shape[1], params["w3"].shape[1], num_classes]
    p = _round_up(max(dims), LANE)

    def pad_mat(w):   # [in, out] -> [P, P], zero padded
        return jnp.pad(w, ((0, p - w.shape[0]), (0, p - w.shape[1])))

    def pad_row(r):   # [1, w] -> [1, P], zero padded
        return jnp.pad(r, ((0, 0), (0, p - r.shape[1])))

    # One lane-dense bf16 weight stack (halves weight DMA bytes).
    w_stack = jnp.stack([
        pad_mat(params["we"]), pad_mat(params["w1"]), pad_mat(params["w2"]),
        pad_mat(params["w3"]), pad_mat(params["w4"]),
    ]).astype(jnp.bfloat16)                                  # [5, P, P] bf16

    # One f32 buffer for all (1, w) params (biases / gamma / beta).
    rows = [pad_row(params[k]) for k in
            ("be", "b1", "b2", "b3", "b4",                   # rows 0..4
             "g1", "g2", "g3", "g4",                         # rows 5..8
             "bt1", "bt2", "bt3", "bt4")]                    # rows 9..12
    rows.append(jnp.zeros((16 - len(rows), p), jnp.float32))
    p_stack = jnp.concatenate(rows, axis=0)                  # [16, P] f32

    # Pad + cast the activations to bf16 in the wrapper: halves the largest
    # input DMA stream and removes the layer-0 cast from the kernel.
    x_pad = jnp.pad(x, ((0, 0), (0, p - d_in))).astype(jnp.bfloat16)

    vmem = pl.BlockSpec(memory_space=pltpu.MemorySpace.VMEM)
    out = pl.pallas_call(
        _classifier_kernel,
        out_shape=jax.ShapeDtypeStruct((n, p), jnp.float32),
        in_specs=[vmem, vmem, vmem],
        out_specs=vmem,
        # 32 MiB scoped VMEM fits the all-resident design on every generation
        # (v7x physical VMEM is 64 MiB); caps N at roughly ~11-14K rows.
        compiler_params=pltpu.CompilerParams(vmem_limit_bytes=32 * 1024 * 1024),
    )(x_pad, w_stack, p_stack)

    # Slice padded logits back to the real class count.
    return out[:, :num_classes]


def init_params(key, d_in, latent_dim, n_hidden, num_classes):
    """Deterministic synthetic parameter init (matches the module's shapes).

    Weights are stored [in_features, out_features] (transposed vs nn.Linear).
    """
    dims = [
        ("we", d_in, latent_dim),
        ("w1", latent_dim, n_hidden),
        ("w2", n_hidden, n_hidden // 2),
        ("w3", n_hidden // 2, n_hidden // 4),
        ("w4", n_hidden // 4, num_classes),
    ]
    params = {}
    for name, fan_in, fan_out in dims:
        key, kw, kb = jax.random.split(key, 3)
        bound = 1.0 / jnp.sqrt(jnp.float32(fan_in))
        params[name] = jax.random.uniform(
            kw, (fan_in, fan_out), jnp.float32, -bound, bound)
        params[name.replace("w", "b")] = jax.random.uniform(
            kb, (1, fan_out), jnp.float32, -bound, bound)
    # BatchNorm affine params: gamma=1, beta=0 (PyTorch default init)
    for i, width in enumerate(
        [n_hidden, n_hidden // 2, n_hidden // 4, num_classes], start=1
    ):
        params[f"g{i}"] = jnp.ones((1, width), jnp.float32)
        params[f"bt{i}"] = jnp.zeros((1, width), jnp.float32)
    return params


if __name__ == "__main__":
    # Shapes consistent with the module: flattened images -> latent -> MLP head.
    N = 256          # batch: >=128 fills the MXU rows; BN stats over the full batch
    D_IN = 64        # flattened input dim (e.g. 1x8x8 images)
    LATENT = 32      # encoder.latent_dim
    N_HIDDEN = 32    # hparams['n_hidden']
    NUM_CLASSES = 10 # hparams['num_classes']

    key = jax.random.PRNGKey(0)
    key, kx = jax.random.split(key)
    x = jax.random.normal(kx, (N, D_IN), jnp.float32)
    params = init_params(key, D_IN, LATENT, N_HIDDEN, NUM_CLASSES)

    out = classifier_forward(x, params)
    out = jax.block_until_ready(out)
    assert out.shape == (N, NUM_CLASSES) and out.dtype == jnp.float32
    assert bool(jnp.all(jnp.isfinite(out)))
    print("KERNEL_OK")
</pallas_src>

<mosaic_0001>
module attributes {stable_mosaic.version = 11 : i64} {
  func.func @_classifier_kernel(%arg0: memref<256x128xbf16, #tpu.memory_space<vmem>>, %arg1: memref<5x128x128xbf16, #tpu.memory_space<vmem>>, %arg2: memref<16x128xf32, #tpu.memory_space<vmem>>, %arg3: memref<256x128xf32, #tpu.memory_space<vmem>>) attributes {dimension_semantics = [], scalar_prefetch = 0 : i64, scratch_operands = 0 : i64, tpu.core_type = #tpu.core_type<tc>} {
    %c0 = arith.constant 0 : index
    %c0_0 = arith.constant 0 : index
    %0 = vector.load %arg0[%c0, %c0_0] : memref<256x128xbf16, #tpu.memory_space<vmem>>, vector<256x128xbf16>
    %c0_1 = arith.constant 0 : index
    %c0_2 = arith.constant 0 : index
    %c0_3 = arith.constant 0 : index
    %1 = vector.load %arg1[%c0_1, %c0_2, %c0_3] : memref<5x128x128xbf16, #tpu.memory_space<vmem>>, vector<1x128x128xbf16>
    %2 = vector.shape_cast %1 : vector<1x128x128xbf16> to vector<128x128xbf16>
    %cst = arith.constant dense<0.000000e+00> : vector<256x128xf32>
    %3 = tpu.matmul %0, %2, %cst {dimension_numbers = #tpu.dot_dimension_numbers<[1], [0], [0], [1], [0, 0, 1, 1], [], []>} : vector<256x128xbf16>, vector<128x128xbf16>, vector<256x128xf32> -> vector<256x128xf32>
    %c0_4 = arith.constant 0 : index
    %c0_5 = arith.constant 0 : index
    %4 = vector.load %arg2[%c0_4, %c0_5] : memref<16x128xf32, #tpu.memory_space<vmem>>, vector<1x128xf32>
    %5 = vector.broadcast %4 : vector<1x128xf32> to vector<256x128xf32>
    %6 = arith.addf %3, %5 : vector<256x128xf32>
    %cst_6 = arith.constant 0.00999999977 : f32
    %7 = vector.broadcast %cst_6 : f32 to vector<256x128xf32>
    %8 = arith.mulf %7, %6 : vector<256x128xf32>
    %9 = arith.maximumf %6, %8 : vector<256x128xf32>
    %10 = arith.truncf %9 : vector<256x128xf32> to vector<256x128xbf16>
    %c1 = arith.constant 1 : index
    %c0_7 = arith.constant 0 : index
    %c0_8 = arith.constant 0 : index
    %11 = vector.load %arg1[%c1, %c0_7, %c0_8] : memref<5x128x128xbf16, #tpu.memory_space<vmem>>, vector<1x128x128xbf16>
    %12 = vector.shape_cast %11 : vector<1x128x128xbf16> to vector<128x128xbf16>
    %cst_9 = arith.constant dense<0.000000e+00> : vector<256x128xf32>
    %13 = tpu.matmul %10, %12, %cst_9 {dimension_numbers = #tpu.dot_dimension_numbers<[1], [0], [0], [1], [0, 0, 1, 1], [], []>} : vector<256x128xbf16>, vector<128x128xbf16>, vector<256x128xf32> -> vector<256x128xf32>
    %c1_10 = arith.constant 1 : index
    %c0_11 = arith.constant 0 : index
    %14 = vector.load %arg2[%c1_10, %c0_11] : memref<16x128xf32, #tpu.memory_space<vmem>>, vector<1x128xf32>
    %15 = vector.broadcast %14 : vector<1x128xf32> to vector<256x128xf32>
    %16 = arith.addf %13, %15 : vector<256x128xf32>
    %cst_12 = arith.constant 0.00999999977 : f32
    %17 = vector.broadcast %cst_12 : f32 to vector<256x128xf32>
    %18 = arith.mulf %17, %16 : vector<256x128xf32>
    %19 = arith.maximumf %16, %18 : vector<256x128xf32>
    %cst_13 = arith.constant dense<0.000000e+00> : vector<128xf32>
    %20 = vector.multi_reduction <add>, %19, %cst_13 [0] : vector<256x128xf32> to vector<128xf32>
    %21 = vector.shape_cast %20 : vector<128xf32> to vector<1x128xf32>
    %22 = arith.mulf %19, %19 : vector<256x128xf32>
    %cst_14 = arith.constant dense<0.000000e+00> : vector<128xf32>
    %23 = vector.multi_reduction <add>, %22, %cst_14 [0] : vector<256x128xf32> to vector<128xf32>
    %24 = vector.shape_cast %23 : vector<128xf32> to vector<1x128xf32>
    %cst_15 = arith.constant 3.906250e-03 : f32
    %25 = vector.broadcast %cst_15 : f32 to vector<1x128xf32>
    %26 = arith.mulf %21, %25 : vector<1x128xf32>
    %cst_16 = arith.constant 3.906250e-03 : f32
    %27 = vector.broadcast %cst_16 : f32 to vector<1x128xf32>
    %28 = arith.mulf %24, %27 : vector<1x128xf32>
    %29 = arith.mulf %26, %26 : vector<1x128xf32>
    %30 = arith.subf %28, %29 : vector<1x128xf32>
    %cst_17 = arith.constant 0.000000e+00 : f32
    %31 = vector.broadcast %cst_17 : f32 to vector<1x128xf32>
    %32 = arith.maximumf %30, %31 : vector<1x128xf32>
    %cst_18 = arith.constant 9.99999974E-6 : f32
    %33 = vector.broadcast %cst_18 : f32 to vector<1x128xf32>
    %34 = arith.addf %32, %33 : vector<1x128xf32>
    %35 = math.rsqrt %34 : vector<1x128xf32>
    %c5 = arith.constant 5 : index
    %c0_19 = arith.constant 0 : index
    %36 = vector.load %arg2[%c5, %c0_19] : memref<16x128xf32, #tpu.memory_space<vmem>>, vector<1x128xf32>
    %37 = arith.mulf %35, %36 : vector<1x128xf32>
    %c9 = arith.constant 9 : index
    %c0_20 = arith.constant 0 : index
    %38 = vector.load %arg2[%c9, %c0_20] : memref<16x128xf32, #tpu.memory_space<vmem>>, vector<1x128xf32>
    %39 = arith.mulf %26, %37 : vector<1x128xf32>
    %40 = arith.subf %38, %39 : vector<1x128xf32>
    %41 = vector.broadcast %37 : vector<1x128xf32> to vector<256x128xf32>
    %42 = arith.mulf %19, %41 : vector<256x128xf32>
    %43 = vector.broadcast %40 : vector<1x128xf32> to vector<256x128xf32>
    %44 = arith.addf %42, %43 : vector<256x128xf32>
    %45 = arith.truncf %44 : vector<256x128xf32> to vector<256x128xbf16>
    %c2 = arith.constant 2 : index
    %c0_21 = arith.constant 0 : index
    %c0_22 = arith.constant 0 : index
    %46 = vector.load %arg1[%c2, %c0_21, %c0_22] : memref<5x128x128xbf16, #tpu.memory_space<vmem>>, vector<1x128x128xbf16>
    %47 = vector.shape_cast %46 : vector<1x128x128xbf16> to vector<128x128xbf16>
    %cst_23 = arith.constant dense<0.000000e+00> : vector<256x128xf32>
    %48 = tpu.matmul %45, %47, %cst_23 {dimension_numbers = #tpu.dot_dimension_numbers<[1], [0], [0], [1], [0, 0, 1, 1], [], []>} : vector<256x128xbf16>, vector<128x128xbf16>, vector<256x128xf32> -> vector<256x128xf32>
    %c2_24 = arith.constant 2 : index
    %c0_25 = arith.constant 0 : index
    %49 = vector.load %arg2[%c2_24, %c0_25] : memref<16x128xf32, #tpu.memory_space<vmem>>, vector<1x128xf32>
    %50 = vector.broadcast %49 : vector<1x128xf32> to vector<256x128xf32>
    %51 = arith.addf %48, %50 : vector<256x128xf32>
    %cst_26 = arith.constant 0.00999999977 : f32
    %52 = vector.broadcast %cst_26 : f32 to vector<256x128xf32>
    %53 = arith.mulf %52, %51 : vector<256x128xf32>
    %54 = arith.maximumf %51, %53 : vector<256x128xf32>
    %cst_27 = arith.constant dense<0.000000e+00> : vector<128xf32>
    %55 = vector.multi_reduction <add>, %54, %cst_27 [0] : vector<256x128xf32> to vector<128xf32>
    %56 = vector.shape_cast %55 : vector<128xf32> to vector<1x128xf32>
    %57 = arith.mulf %54, %54 : vector<256x128xf32>
    %cst_28 = arith.constant dense<0.000000e+00> : vector<128xf32>
    %58 = vector.multi_reduction <add>, %57, %cst_28 [0] : vector<256x128xf32> to vector<128xf32>
    %59 = vector.shape_cast %58 : vector<128xf32> to vector<1x128xf32>
    %cst_29 = arith.constant 3.906250e-03 : f32
    %60 = vector.broadcast %cst_29 : f32 to vector<1x128xf32>
    %61 = arith.mulf %56, %60 : vector<1x128xf32>
    %cst_30 = arith.constant 3.906250e-03 : f32
    %62 = vector.broadcast %cst_30 : f32 to vector<1x128xf32>
    %63 = arith.mulf %59, %62 : vector<1x128xf32>
    %64 = arith.mulf %61, %61 : vector<1x128xf32>
    %65 = arith.subf %63, %64 : vector<1x128xf32>
    %cst_31 = arith.constant 0.000000e+00 : f32
    %66 = vector.broadcast %cst_31 : f32 to vector<1x128xf32>
    %67 = arith.maximumf %65, %66 : vector<1x128xf32>
    %cst_32 = arith.constant 9.99999974E-6 : f32
    %68 = vector.broadcast %cst_32 : f32 to vector<1x128xf32>
    %69 = arith.addf %67, %68 : vector<1x128xf32>
    %70 = math.rsqrt %69 : vector<1x128xf32>
    %c6 = arith.constant 6 : index
    %c0_33 = arith.constant 0 : index
    %71 = vector.load %arg2[%c6, %c0_33] : memref<16x128xf32, #tpu.memory_space<vmem>>, vector<1x128xf32>
    %72 = arith.mulf %70, %71 : vector<1x128xf32>
    %c10 = arith.constant 10 : index
    %c0_34 = arith.constant 0 : index
    %73 = vector.load %arg2[%c10, %c0_34] : memref<16x128xf32, #tpu.memory_space<vmem>>, vector<1x128xf32>
    %74 = arith.mulf %61, %72 : vector<1x128xf32>
    %75 = arith.subf %73, %74 : vector<1x128xf32>
    %76 = vector.broadcast %72 : vector<1x128xf32> to vector<256x128xf32>
    %77 = arith.mulf %54, %76 : vector<256x128xf32>
    %78 = vector.broadcast %75 : vector<1x128xf32> to vector<256x128xf32>
    %79 = arith.addf %77, %78 : vector<256x128xf32>
    %80 = arith.truncf %79 : vector<256x128xf32> to vector<256x128xbf16>
    %c3 = arith.constant 3 : index
    %c0_35 = arith.constant 0 : index
    %c0_36 = arith.constant 0 : index
    %81 = vector.load %arg1[%c3, %c0_35, %c0_36] : memref<5x128x128xbf16, #tpu.memory_space<vmem>>, vector<1x128x128xbf16>
    %82 = vector.shape_cast %81 : vector<1x128x128xbf16> to vector<128x128xbf16>
    %cst_37 = arith.constant dense<0.000000e+00> : vector<256x128xf32>
    %83 = tpu.matmul %80, %82, %cst_37 {dimension_numbers = #tpu.dot_dimension_numbers<[1], [0], [0], [1], [0, 0, 1, 1], [], []>} : vector<256x128xbf16>, vector<128x128xbf16>, vector<256x128xf32> -> vector<256x128xf32>
    %c3_38 = arith.constant 3 : index
    %c0_39 = arith.constant 0 : index
    %84 = vector.load %arg2[%c3_38, %c0_39] : memref<16x128xf32, #tpu.memory_space<vmem>>, vector<1x128xf32>
    %85 = vector.broadcast %84 : vector<1x128xf32> to vector<256x128xf32>
    %86 = arith.addf %83, %85 : vector<256x128xf32>
    %cst_40 = arith.constant 0.00999999977 : f32
    %87 = vector.broadcast %cst_40 : f32 to vector<256x128xf32>
    %88 = arith.mulf %87, %86 : vector<256x128xf32>
    %89 = arith.maximumf %86, %88 : vector<256x128xf32>
    %cst_41 = arith.constant dense<0.000000e+00> : vector<128xf32>
    %90 = vector.multi_reduction <add>, %89, %cst_41 [0] : vector<256x128xf32> to vector<128xf32>
    %91 = vector.shape_cast %90 : vector<128xf32> to vector<1x128xf32>
    %92 = arith.mulf %89, %89 : vector<256x128xf32>
    %cst_42 = arith.constant dense<0.000000e+00> : vector<128xf32>
    %93 = vector.multi_reduction <add>, %92, %cst_42 [0] : vector<256x128xf32> to vector<128xf32>
    %94 = vector.shape_cast %93 : vector<128xf32> to vector<1x128xf32>
    %cst_43 = arith.constant 3.906250e-03 : f32
    %95 = vector.broadcast %cst_43 : f32 to vector<1x128xf32>
    %96 = arith.mulf %91, %95 : vector<1x128xf32>
    %cst_44 = arith.constant 3.906250e-03 : f32
    %97 = vector.broadcast %cst_44 : f32 to vector<1x128xf32>
    %98 = arith.mulf %94, %97 : vector<1x128xf32>
    %99 = arith.mulf %96, %96 : vector<1x128xf32>
    %100 = arith.subf %98, %99 : vector<1x128xf32>
    %cst_45 = arith.constant 0.000000e+00 : f32
    %101 = vector.broadcast %cst_45 : f32 to vector<1x128xf32>
    %102 = arith.maximumf %100, %101 : vector<1x128xf32>
    %cst_46 = arith.constant 9.99999974E-6 : f32
    %103 = vector.broadcast %cst_46 : f32 to vector<1x128xf32>
    %104 = arith.addf %102, %103 : vector<1x128xf32>
    %105 = math.rsqrt %104 : vector<1x128xf32>
    %c7 = arith.constant 7 : index
    %c0_47 = arith.constant 0 : index
    %106 = vector.load %arg2[%c7, %c0_47] : memref<16x128xf32, #tpu.memory_space<vmem>>, vector<1x128xf32>
    %107 = arith.mulf %105, %106 : vector<1x128xf32>
    %c11 = arith.constant 11 : index
    %c0_48 = arith.constant 0 : index
    %108 = vector.load %arg2[%c11, %c0_48] : memref<16x128xf32, #tpu.memory_space<vmem>>, vector<1x128xf32>
    %109 = arith.mulf %96, %107 : vector<1x128xf32>
    %110 = arith.subf %108, %109 : vector<1x128xf32>
    %111 = vector.broadcast %107 : vector<1x128xf32> to vector<256x128xf32>
    %112 = arith.mulf %89, %111 : vector<256x128xf32>
    %113 = vector.broadcast %110 : vector<1x128xf32> to vector<256x128xf32>
    %114 = arith.addf %112, %113 : vector<256x128xf32>
    %115 = arith.truncf %114 : vector<256x128xf32> to vector<256x128xbf16>
    %c4 = arith.constant 4 : index
    %c0_49 = arith.constant 0 : index
    %c0_50 = arith.constant 0 : index
    %116 = vector.load %arg1[%c4, %c0_49, %c0_50] : memref<5x128x128xbf16, #tpu.memory_space<vmem>>, vector<1x128x128xbf16>
    %117 = vector.shape_cast %116 : vector<1x128x128xbf16> to vector<128x128xbf16>
    %cst_51 = arith.constant dense<0.000000e+00> : vector<256x128xf32>
    %118 = tpu.matmul %115, %117, %cst_51 {dimension_numbers = #tpu.dot_dimension_numbers<[1], [0], [0], [1], [0, 0, 1, 1], [], []>} : vector<256x128xbf16>, vector<128x128xbf16>, vector<256x128xf32> -> vector<256x128xf32>
    %c4_52 = arith.constant 4 : index
    %c0_53 = arith.constant 0 : index
    %119 = vector.load %arg2[%c4_52, %c0_53] : memref<16x128xf32, #tpu.memory_space<vmem>>, vector<1x128xf32>
    %120 = vector.broadcast %119 : vector<1x128xf32> to vector<256x128xf32>
    %121 = arith.addf %118, %120 : vector<256x128xf32>
    %cst_54 = arith.constant 0.00999999977 : f32
    %122 = vector.broadcast %cst_54 : f32 to vector<256x128xf32>
    %123 = arith.mulf %122, %121 : vector<256x128xf32>
    %124 = arith.maximumf %121, %123 : vector<256x128xf32>
    %cst_55 = arith.constant dense<0.000000e+00> : vector<128xf32>
    %125 = vector.multi_reduction <add>, %124, %cst_55 [0] : vector<256x128xf32> to vector<128xf32>
    %126 = vector.shape_cast %125 : vector<128xf32> to vector<1x128xf32>
    %127 = arith.mulf %124, %124 : vector<256x128xf32>
    %cst_56 = arith.constant dense<0.000000e+00> : vector<128xf32>
    %128 = vector.multi_reduction <add>, %127, %cst_56 [0] : vector<256x128xf32> to vector<128xf32>
    %129 = vector.shape_cast %128 : vector<128xf32> to vector<1x128xf32>
    %cst_57 = arith.constant 3.906250e-03 : f32
    %130 = vector.broadcast %cst_57 : f32 to vector<1x128xf32>
    %131 = arith.mulf %126, %130 : vector<1x128xf32>
    %cst_58 = arith.constant 3.906250e-03 : f32
    %132 = vector.broadcast %cst_58 : f32 to vector<1x128xf32>
    %133 = arith.mulf %129, %132 : vector<1x128xf32>
    %134 = arith.mulf %131, %131 : vector<1x128xf32>
    %135 = arith.subf %133, %134 : vector<1x128xf32>
    %cst_59 = arith.constant 0.000000e+00 : f32
    %136 = vector.broadcast %cst_59 : f32 to vector<1x128xf32>
    %137 = arith.maximumf %135, %136 : vector<1x128xf32>
    %cst_60 = arith.constant 9.99999974E-6 : f32
    %138 = vector.broadcast %cst_60 : f32 to vector<1x128xf32>
    %139 = arith.addf %137, %138 : vector<1x128xf32>
    %140 = math.rsqrt %139 : vector<1x128xf32>
    %c8 = arith.constant 8 : index
    %c0_61 = arith.constant 0 : index
    %141 = vector.load %arg2[%c8, %c0_61] : memref<16x128xf32, #tpu.memory_space<vmem>>, vector<1x128xf32>
    %142 = arith.mulf %140, %141 : vector<1x128xf32>
    %c12 = arith.constant 12 : index
    %c0_62 = arith.constant 0 : index
    %143 = vector.load %arg2[%c12, %c0_62] : memref<16x128xf32, #tpu.memory_space<vmem>>, vector<1x128xf32>
    %144 = arith.mulf %131, %142 : vector<1x128xf32>
    %145 = arith.subf %143, %144 : vector<1x128xf32>
    %146 = vector.broadcast %142 : vector<1x128xf32> to vector<256x128xf32>
    %147 = arith.mulf %124, %146 : vector<256x128xf32>
    %148 = vector.broadcast %145 : vector<1x128xf32> to vector<256x128xf32>
    %149 = arith.addf %147, %148 : vector<256x128xf32>
    %c0_63 = arith.constant 0 : index
    %c0_64 = arith.constant 0 : index
    %150 = vector.load %arg3[%c0_63, %c0_64] : memref<256x128xf32, #tpu.memory_space<vmem>>, vector<256x128xf32>
    tpu.vector_store %arg3[%c0_63, %c0_64], %149 {strides = array<i32>} : memref<256x128xf32, #tpu.memory_space<vmem>>, vector<256x128xf32>,
    return
  }
}

</mosaic_0001>

<llo_original>
// kernel: tpu_custom_call.1
$region0: #{tpu_custom_call.1}
  #allocation0 [shape = 'u32[]', space=smem, size = 0x4, offset = 0x4, fixed_abs, tag = 'smem constant byte address 0x4 - core index']
  #allocation1 [shape = 'u32[144,128]{1,0:T(1,128)}', space=vmem, size = 0x12000, scoped, tag = 'internal scratch']
  %s0 = inlined_call_operand.hbm [shape: bf16[256,128], index: 0, kind: input, shape index: {}]
  %s1 = inlined_call_operand.hbm [shape: bf16[5,128,128], index: 1, kind: input, shape index: {}]
  %s2 = inlined_call_operand.hbm [shape: f32[16,128], index: 2, kind: input, shape index: {}]
  %s3 = inlined_call_operand.hbm [shape: f32[256,128], index: 3, kind: output, shape index: {}]
  %s4 = sld [smem:[#allocation0]]
  $region34: #{tpu_custom_call.1} parent=0
    _
  %s6 = ssub.s32 1, %s4
  %s7 = scalar_select 0, %s6, %s4
  $region1: #{tpu_custom_call.1} parent=0
    #allocation2 [shape = 'u8[65536]{0}', space=vmem, size = 0x10000, scoped, tag = 'input window, operand 0, single buffered']
    #allocation3 [shape = 's32[1]{0}', space=sflag, size = 0x4, scoped, tag = 'scoped memory for tpu_custom_call.1']
    #allocation4 [shape = 's32[1]{0}', space=sflag, size = 0x4, scoped, tag = 'scoped memory for tpu_custom_call.1']
    #allocation5 [shape = 'u8[163840]{0}', space=vmem, size = 0x28000, scoped, tag = 'input window, operand 1, single buffered']
    #allocation6 [shape = 's32[1]{0}', space=sflag, size = 0x4, scoped, tag = 'scoped memory for tpu_custom_call.1']
    #allocation7 [shape = 'u8[8192]{0}', space=vmem, size = 0x2000, scoped, tag = 'input window, operand 2, single buffered']
    #allocation8 [shape = 'u8[131072]{0}', space=vmem, size = 0x20000, scoped, tag = 'output window, operand 0, single buffered']
    %8 = vsyncpa [#allocation3], 0
    %9 = vsyncpa [#allocation6], 0
    %10 = vsyncpa [#allocation4], 0
    // Predicated region
    $region2: #{tpu_custom_call.1} parent=1 // pred_check
      _
    $region3: #{tpu_custom_call.1} parent=1 // pred_check_branch
      %12 = sbr.rel (0) target = $region5
    $region4: #{tpu_custom_call.1} parent=1 // pred_region
      %s14 = ssub.s32 2048, 2048
      %15 = vsyncadd [#allocation3], %s14
      %s16 = sshll.u32 [#allocation2], 4
      %s17 = int_to_ptr.vmem [resolvable:$true] %s16
      %22 = dma.hbm_to_vmem [thread:$0]  %s0, 2048, %s17, [#allocation3], 64, 64, 4
    $region5: #{tpu_custom_call.1} parent=1 // pred_fallthru
      _
    // Predicated region
    $region6: #{tpu_custom_call.1} parent=1 // pred_check
      _
    $region7: #{tpu_custom_call.1} parent=1 // pred_check_branch
      %24 = sbr.rel (0) target = $region9
    $region8: #{tpu_custom_call.1} parent=1 // pred_region
      %s26 = ssub.s32 5120, 5120
      %27 = vsyncadd [#allocation6], %s26
      %s28 = sshll.u32 [#allocation5], 4
      %s29 = int_to_ptr.vmem [resolvable:$true] %s28
      %34 = dma.hbm_to_vmem [thread:$0]  %s1, 5120, %s29, [#allocation6], 64, 64, 4
    $region9: #{tpu_custom_call.1} parent=1 // pred_fallthru
      _
    // Predicated region
    $region10: #{tpu_custom_call.1} parent=1 // pred_check
      _
    $region11: #{tpu_custom_call.1} parent=1 // pred_check_branch
      %36 = sbr.rel (0) target = $region13
    $region12: #{tpu_custom_call.1} parent=1 // pred_region
      %s38 = ssub.s32 256, 256
      %39 = vsyncadd [#allocation6], %s38
      %s40 = sshll.u32 [#allocation7], 4
      %s41 = int_to_ptr.vmem [resolvable:$true] %s40
      %46 = dma.hbm_to_vmem [thread:$0]  %s2, 256, %s41, [#allocation6], 128, 128, 8
    $region13: #{tpu_custom_call.1} parent=1 // pred_fallthru
      _
    // Predicated region
    $region14: #{tpu_custom_call.1} parent=1 // pred_check
      _
    $region15: #{tpu_custom_call.1} parent=1 // pred_check_branch
      %48 = sbr.rel (0) target = $region17
    $region16: #{tpu_custom_call.1} parent=1 // pred_region
      %49 = dma.done [#allocation3], 2048
    $region17: #{tpu_custom_call.1} parent=1 // pred_fallthru
      _
    // Predicated region
    $region18: #{tpu_custom_call.1} parent=1 // pred_check
      _
    $region19: #{tpu_custom_call.1} parent=1 // pred_check_branch
      %51 = sbr.rel (0) target = $region21
    $region20: #{tpu_custom_call.1} parent=1 // pred_region
      %52 = dma.done [#allocation6], 5120
    $region21: #{tpu_custom_call.1} parent=1 // pred_fallthru
      _
    // Predicated region
    $region22: #{tpu_custom_call.1} parent=1 // pred_check
      _
    $region23: #{tpu_custom_call.1} parent=1 // pred_check_branch
      %54 = sbr.rel (0) target = $region25
    $region24: #{tpu_custom_call.1} parent=1 // pred_region
      %55 = dma.done [#allocation6], 256
    $region25: #{tpu_custom_call.1} parent=1 // pred_fallthru
      _
    %v57 = vld [vmem:[#allocation2] sm:$0xf]
    %v58 = vld [vmem:[#allocation2 + $0x4] sm:$0xf]
    %v59 = vld [vmem:[#allocation2 + $0x8] sm:$0xf]
    %v60 = vld [vmem:[#allocation2 + $0xc] sm:$0xf]
    %v61 = vld [vmem:[#allocation2 + $0x10] sm:$0xf]
    %v62 = vld [vmem:[#allocation2 + $0x14] sm:$0xf]
    %v63 = vld [vmem:[#allocation2 + $0x18] sm:$0xf]
    %v64 = vld [vmem:[#allocation2 + $0x1c] sm:$0xf]
    %v65 = vld [vmem:[#allocation2 + $0x20] sm:$0xf]
    %v66 = vld [vmem:[#allocation2 + $0x24] sm:$0xf]
    %v67 = vld [vmem:[#allocation2 + $0x28] sm:$0xf]
    %v68 = vld [vmem:[#allocation2 + $0x2c] sm:$0xf]
    %v69 = vld [vmem:[#allocation2 + $0x30] sm:$0xf]
    %v70 = vld [vmem:[#allocation2 + $0x34] sm:$0xf]
    %v71 = vld [vmem:[#allocation2 + $0x38] sm:$0xf]
    %v72 = vld [vmem:[#allocation2 + $0x3c] sm:$0xf]
    %v73 = vld [vmem:[#allocation2 + $0x40] sm:$0xf]
    %v74 = vld [vmem:[#allocation2 + $0x44] sm:$0xf]
    %v75 = vld [vmem:[#allocation2 + $0x48] sm:$0xf]
    %v76 = vld [vmem:[#allocation2 + $0x4c] sm:$0xf]
    %v77 = vld [vmem:[#allocation2 + $0x50] sm:$0xf]
    %v78 = vld [vmem:[#allocation2 + $0x54] sm:$0xf]
    %v79 = vld [vmem:[#allocation2 + $0x58] sm:$0xf]
    %v80 = vld [vmem:[#allocation2 + $0x5c] sm:$0xf]
    %v81 = vld [vmem:[#allocation2 + $0x60] sm:$0xf]
    %v82 = vld [vmem:[#allocation2 + $0x64] sm:$0xf]
    %v83 = vld [vmem:[#allocation2 + $0x68] sm:$0xf]
    %v84 = vld [vmem:[#allocation2 + $0x6c] sm:$0xf]
    %v85 = vld [vmem:[#allocation2 + $0x70] sm:$0xf]
    %v86 = vld [vmem:[#allocation2 + $0x74] sm:$0xf]
    %v87 = vld [vmem:[#allocation2 + $0x78] sm:$0xf]
    %v88 = vld [vmem:[#allocation2 + $0x7c] sm:$0xf]
    %v89 = vld [vmem:[#allocation5] sm:$0xf]
    %v90 = vld [vmem:[#allocation5 + $0x4] sm:$0xf]
    %v91 = vld [vmem:[#allocation5 + $0x8] sm:$0xf]
    %v92 = vld [vmem:[#allocation5 + $0xc] sm:$0xf]
    %v93 = vld [vmem:[#allocation5 + $0x10] sm:$0xf]
    %v94 = vld [vmem:[#allocation5 + $0x14] sm:$0xf]
    %v95 = vld [vmem:[#allocation5 + $0x18] sm:$0xf]
    %v96 = vld [vmem:[#allocation5 + $0x1c] sm:$0xf]
    %v97 = vld [vmem:[#allocation5 + $0x20] sm:$0xf]
    %v98 = vld [vmem:[#allocation5 + $0x24] sm:$0xf]
    %v99 = vld [vmem:[#allocation5 + $0x28] sm:$0xf]
    %v100 = vld [vmem:[#allocation5 + $0x2c] sm:$0xf]
    %v101 = vld [vmem:[#allocation5 + $0x30] sm:$0xf]
    %v102 = vld [vmem:[#allocation5 + $0x34] sm:$0xf]
    %v103 = vld [vmem:[#allocation5 + $0x38] sm:$0xf]
    %v104 = vld [vmem:[#allocation5 + $0x3c] sm:$0xf]
    %v105 = vld [vmem:[#allocation7] sm:$0x1]
    %v106 = vlaneseq
    %v107 = vshrl.u32 %v106, 7
    %v108 = vsub.s32 0, %v107
    %v109 = vrot.slane %v105, %v108
    %v142 = vunpack.c.l.b16 %v57
    %v143 = vunpack.c.l.b16 %v58
    %v144 = vunpack.c.l.b16 %v59
    %v145 = vunpack.c.l.b16 %v60
    %v146 = vunpack.c.l.b16 %v61
    %v147 = vunpack.c.l.b16 %v62
    %v148 = vunpack.c.l.b16 %v63
    %v149 = vunpack.c.l.b16 %v64
    %v150 = vunpack.c.l.b16 %v65
    %v151 = vunpack.c.l.b16 %v66
    %v152 = vunpack.c.l.b16 %v67
    %v153 = vunpack.c.l.b16 %v68
    %v154 = vunpack.c.l.b16 %v69
    %v155 = vunpack.c.l.b16 %v70
    %v156 = vunpack.c.l.b16 %v71
    %v157 = vunpack.c.l.b16 %v72
    %v158 = vunpack.c.l.b16 %v73
    %v159 = vunpack.c.l.b16 %v74
    %v160 = vunpack.c.l.b16 %v75
    %v161 = vunpack.c.l.b16 %v76
    %v162 = vunpack.c.l.b16 %v77
    %v163 = vunpack.c.l.b16 %v78
    %v164 = vunpack.c.l.b16 %v79
    %v165 = vunpack.c.l.b16 %v80
    %v166 = vunpack.c.l.b16 %v81
    %v167 = vunpack.c.l.b16 %v82
    %v168 = vunpack.c.l.b16 %v83
    %v169 = vunpack.c.l.b16 %v84
    %v170 = vunpack.c.l.b16 %v85
    %v171 = vunpack.c.l.b16 %v86
    %v172 = vunpack.c.l.b16 %v87
    %v173 = vunpack.c.l.b16 %v88
    %v174 = vpack.c.b16 %v143, %v142
    %v175 = vpack.c.b16 %v145, %v144
    %v176 = vpack.c.b16 %v147, %v146
    %v177 = vpack.c.b16 %v149, %v148
    %v178 = vpack.c.b16 %v151, %v150
    %v179 = vpack.c.b16 %v153, %v152
    %v180 = vpack.c.b16 %v155, %v154
    %v181 = vpack.c.b16 %v157, %v156
    %v182 = vpack.c.b16 %v159, %v158
    %v183 = vpack.c.b16 %v161, %v160
    %v184 = vpack.c.b16 %v163, %v162
    %v185 = vpack.c.b16 %v165, %v164
    %v186 = vpack.c.b16 %v167, %v166
    %v187 = vpack.c.b16 %v169, %v168
    %v188 = vpack.c.b16 %v171, %v170
    %v189 = vpack.c.b16 %v173, %v172
    %v222 = vunpack.c.l.b16 %v89
    %v223 = vunpack.c.l.b16 %v90
    %v224 = vunpack.c.l.b16 %v91
    %v225 = vunpack.c.l.b16 %v92
    %v226 = vunpack.c.l.b16 %v93
    %v227 = vunpack.c.l.b16 %v94
    %v228 = vunpack.c.l.b16 %v95
    %v229 = vunpack.c.l.b16 %v96
    %v230 = vunpack.c.l.b16 %v97
    %v231 = vunpack.c.l.b16 %v98
    %v232 = vunpack.c.l.b16 %v99
    %v233 = vunpack.c.l.b16 %v100
    %v234 = vunpack.c.l.b16 %v101
    %v235 = vunpack.c.l.b16 %v102
    %v236 = vunpack.c.l.b16 %v103
    %v237 = vunpack.c.l.b16 %v104
    %v238 = vpack.c.b16 %v223, %v222
    %v239 = vpack.c.b16 %v225, %v224
    %v240 = vpack.c.b16 %v227, %v226
    %v241 = vpack.c.b16 %v229, %v228
    %v242 = vpack.c.b16 %v231, %v230
    %v243 = vpack.c.b16 %v233, %v232
    %v244 = vpack.c.b16 %v235, %v234
    %v245 = vpack.c.b16 %v237, %v236
    %254 = vmatprep.subr.bf16.mxu0 0
    %255 = vmatpush1.bf16.msra.mxu0 %v245
    %256 = vmatprep.subr.bf16.mxu0 0
    %257 = vmatpush1.bf16.msra.mxu0 %v244
    %258 = vmatprep.subr.bf16.mxu0 0
    %259 = vmatpush1.bf16.msra.mxu0 %v243
    %260 = vmatprep.subr.bf16.mxu0 0
    %261 = vmatpush1.bf16.msra.mxu0 %v242
    %262 = vmatprep.subr.bf16.mxu0 0
    %263 = vmatpush1.bf16.msra.mxu0 %v241
    %264 = vmatprep.subr.bf16.mxu0 0
    %265 = vmatpush1.bf16.msra.mxu0 %v240
    %266 = vmatprep.subr.bf16.mxu0 0
    %267 = vmatpush1.bf16.msra.mxu0 %v239
    %268 = vmatprep.subr.bf16.mxu0 0
    %269 = vmatpush1.bf16.msra.mxu0 %v238
    %270 = vmatprep.subr.bf16.mxu0 0
    %271 = vmatpush2.bf16.msra.mxu0 0
    %272 = vmatprep.subr.bf16.mxu0 0
    %273 = vmatpush2.bf16.msra.mxu0 0
    %274 = vmatprep.subr.bf16.mxu0 0
    %275 = vmatpush2.bf16.msra.mxu0 0
    %276 = vmatprep.subr.bf16.mxu0 0
    %277 = vmatpush2.bf16.msra.mxu0 0
    %278 = vmatprep.subr.bf16.mxu0 0
    %279 = vmatpush2.bf16.msra.mxu0 0
    %280 = vmatprep.subr.bf16.mxu0 0
    %281 = vmatpush2.bf16.msra.mxu0 0
    %282 = vmatprep.subr.bf16.mxu0 0
    %283 = vmatpush2.bf16.msra.mxu0 0
    %284 = vmatprep.subr.bf16.mxu0 0
    %285 = vmatpush2.bf16.msra.mxu0 0
    %286 = vmatprep.mubr.bf16.mxu0 0
    %287 = vmatmul.mubr.bf16.gmra.mxu0 %v174
    %v288 = vpop.f32.mrf.mxu0
    %v289 = vadd.f32 %v109, %v288
    %v290 = vpop.f32.mrf.mxu0
    %v291 = vpop.f32.mrf.mxu0
    %v292 = vadd.f32 %v109, %v291
    %v293 = vpop.f32.mrf.mxu0
    %294 = vmatprep.mubr.bf16.mxu0 0
    %295 = vmatmul.mubr.bf16.gmra.mxu0 %v175
    %v296 = vpop.f32.mrf.mxu0
    %v297 = vadd.f32 %v109, %v296
    %v298 = vpop.f32.mrf.mxu0
    %v299 = vpop.f32.mrf.mxu0
    %v300 = vadd.f32 %v109, %v299
    %v301 = vpop.f32.mrf.mxu0
    %302 = vmatprep.mubr.bf16.mxu0 0
    %303 = vmatmul.mubr.bf16.gmra.mxu0 %v176
    %v304 = vpop.f32.mrf.mxu0
    %v305 = vadd.f32 %v109, %v304
    %v306 = vpop.f32.mrf.mxu0
    %v307 = vpop.f32.mrf.mxu0
    %v308 = vadd.f32 %v109, %v307
    %v309 = vpop.f32.mrf.mxu0
    %310 = vmatprep.mubr.bf16.mxu0 0
    %311 = vmatmul.mubr.bf16.gmra.mxu0 %v177
    %v312 = vpop.f32.mrf.mxu0
    %v313 = vadd.f32 %v109, %v312
    %v314 = vpop.f32.mrf.mxu0
    %v315 = vpop.f32.mrf.mxu0
    %v316 = vadd.f32 %v109, %v315
    %v317 = vpop.f32.mrf.mxu0
    %318 = vmatprep.mubr.bf16.mxu0 0
    %319 = vmatmul.mubr.bf16.gmra.mxu0 %v178
    %v320 = vpop.f32.mrf.mxu0
    %v321 = vadd.f32 %v109, %v320
    %v322 = vpop.f32.mrf.mxu0
    %v323 = vpop.f32.mrf.mxu0
    %v324 = vadd.f32 %v109, %v323
    %v325 = vpop.f32.mrf.mxu0
    %326 = vmatprep.mubr.bf16.mxu0 0
    %327 = vmatmul.mubr.bf16.gmra.mxu0 %v179
    %v328 = vpop.f32.mrf.mxu0
    %v329 = vadd.f32 %v109, %v328
    %v330 = vpop.f32.mrf.mxu0
    %v331 = vpop.f32.mrf.mxu0
    %v332 = vadd.f32 %v109, %v331
    %v333 = vpop.f32.mrf.mxu0
    %334 = vmatprep.mubr.bf16.mxu0 0
    %335 = vmatmul.mubr.bf16.gmra.mxu0 %v180
    %v336 = vpop.f32.mrf.mxu0
    %v337 = vadd.f32 %v109, %v336
    %v338 = vpop.f32.mrf.mxu0
    %v339 = vpop.f32.mrf.mxu0
    %v340 = vadd.f32 %v109, %v339
    %v341 = vpop.f32.mrf.mxu0
    %342 = vmatprep.mubr.bf16.mxu0 0
    %343 = vmatmul.mubr.bf16.gmra.mxu0 %v181
    %v344 = vpop.f32.mrf.mxu0
    %v345 = vadd.f32 %v109, %v344
    %v346 = vpop.f32.mrf.mxu0
    %v347 = vpop.f32.mrf.mxu0
    %v348 = vadd.f32 %v109, %v347
    %v349 = vpop.f32.mrf.mxu0
    %350 = vmatprep.mubr.bf16.mxu0 0
    %351 = vmatmul.mubr.bf16.gmra.mxu0 %v182
    %v352 = vpop.f32.mrf.mxu0
    %v353 = vadd.f32 %v109, %v352
    %v354 = vpop.f32.mrf.mxu0
    %v355 = vpop.f32.mrf.mxu0
    %v356 = vadd.f32 %v109, %v355
    %v357 = vpop.f32.mrf.mxu0
    %358 = vmatprep.mubr.bf16.mxu0 0
    %359 = vmatmul.mubr.bf16.gmra.mxu0 %v183
    %v360 = vpop.f32.mrf.mxu0
    %v361 = vadd.f32 %v109, %v360
    %v362 = vpop.f32.mrf.mxu0
    %v363 = vpop.f32.mrf.mxu0
    %v364 = vadd.f32 %v109, %v363
    %v365 = vpop.f32.mrf.mxu0
    %366 = vmatprep.mubr.bf16.mxu0 0
    %367 = vmatmul.mubr.bf16.gmra.mxu0 %v184
    %v368 = vpop.f32.mrf.mxu0
    %v369 = vadd.f32 %v109, %v368
    %v370 = vpop.f32.mrf.mxu0
    %v371 = vpop.f32.mrf.mxu0
    %v372 = vadd.f32 %v109, %v371
    %v373 = vpop.f32.mrf.mxu0
    %374 = vmatprep.mubr.bf16.mxu0 0
    %375 = vmatmul.mubr.bf16.gmra.mxu0 %v185
    %v376 = vpop.f32.mrf.mxu0
    %v377 = vadd.f32 %v109, %v376
    %v378 = vpop.f32.mrf.mxu0
    %v379 = vpop.f32.mrf.mxu0
    %v380 = vadd.f32 %v109, %v379
    %v381 = vpop.f32.mrf.mxu0
    %382 = vmatprep.mubr.bf16.mxu0 0
    %383 = vmatmul.mubr.bf16.gmra.mxu0 %v186
    %v384 = vpop.f32.mrf.mxu0
    %v385 = vadd.f32 %v109, %v384
    %v386 = vpop.f32.mrf.mxu0
    %v387 = vpop.f32.mrf.mxu0
    %v388 = vadd.f32 %v109, %v387
    %v389 = vpop.f32.mrf.mxu0
    %390 = vmatprep.mubr.bf16.mxu0 0
    %391 = vmatmul.mubr.bf16.gmra.mxu0 %v187
    %v392 = vpop.f32.mrf.mxu0
    %v393 = vadd.f32 %v109, %v392
    %v394 = vpop.f32.mrf.mxu0
    %v395 = vpop.f32.mrf.mxu0
    %v396 = vadd.f32 %v109, %v395
    %v397 = vpop.f32.mrf.mxu0
    %398 = vmatprep.mubr.bf16.mxu0 0
    %399 = vmatmul.mubr.bf16.gmra.mxu0 %v188
    %v400 = vpop.f32.mrf.mxu0
    %v401 = vadd.f32 %v109, %v400
    %v402 = vpop.f32.mrf.mxu0
    %v403 = vpop.f32.mrf.mxu0
    %v404 = vadd.f32 %v109, %v403
    %v405 = vpop.f32.mrf.mxu0
    %406 = vmatprep.mubr.bf16.mxu0 0
    %407 = vmatmul.mubr.bf16.gmra.mxu0 %v189
    %v408 = vpop.f32.mrf.mxu0
    %v409 = vadd.f32 %v109, %v408
    %v410 = vpop.f32.mrf.mxu0
    %v411 = vpop.f32.mrf.mxu0
    %v412 = vadd.f32 %v109, %v411
    %v413 = vpop.f32.mrf.mxu0
    %414 = vdwg.mxu0
    %v415 = vmul.f32 %v289, 0.01
    %v416 = vmul.f32 %v292, 0.01
    %v417 = vmul.f32 %v297, 0.01
    %v418 = vmul.f32 %v300, 0.01
    %v419 = vmul.f32 %v305, 0.01
    %v420 = vmul.f32 %v308, 0.01
    %v421 = vmul.f32 %v313, 0.01
    %v422 = vmul.f32 %v316, 0.01
    %v423 = vmul.f32 %v321, 0.01
    %v424 = vmul.f32 %v324, 0.01
    %v425 = vmul.f32 %v329, 0.01
    %v426 = vmul.f32 %v332, 0.01
    %v427 = vmul.f32 %v337, 0.01
    %v428 = vmul.f32 %v340, 0.01
    %v429 = vmul.f32 %v345, 0.01
    %v430 = vmul.f32 %v348, 0.01
    %v431 = vmul.f32 %v353, 0.01
    %v432 = vmul.f32 %v356, 0.01
    %v433 = vmul.f32 %v361, 0.01
    %v434 = vmul.f32 %v364, 0.01
    %v435 = vmul.f32 %v369, 0.01
    %v436 = vmul.f32 %v372, 0.01
    %v437 = vmul.f32 %v377, 0.01
    %v438 = vmul.f32 %v380, 0.01
    %v439 = vmul.f32 %v385, 0.01
    %v440 = vmul.f32 %v388, 0.01
    %v441 = vmul.f32 %v393, 0.01
    %v442 = vmul.f32 %v396, 0.01
    %v443 = vmul.f32 %v401, 0.01
    %v444 = vmul.f32 %v404, 0.01
    %v445 = vmul.f32 %v409, 0.01
    %v446 = vmul.f32 %v412, 0.01
    %v447 = vmax.f32 %v289, %v415
    %v448 = vmax.f32 %v292, %v416
    %v449 = vmax.f32 %v297, %v417
    %v450 = vmax.f32 %v300, %v418
    %v451 = vmax.f32 %v305, %v419
    %v452 = vmax.f32 %v308, %v420
    %v453 = vmax.f32 %v313, %v421
    %v454 = vmax.f32 %v316, %v422
    %v455 = vmax.f32 %v321, %v423
    %v456 = vmax.f32 %v324, %v424
    %v457 = vmax.f32 %v329, %v425
    %v458 = vmax.f32 %v332, %v426
    %v459 = vmax.f32 %v337, %v427
    %v460 = vmax.f32 %v340, %v428
    %v461 = vmax.f32 %v345, %v429
    %v462 = vmax.f32 %v348, %v430
    %v463 = vmax.f32 %v353, %v431
    %v464 = vmax.f32 %v356, %v432
    %v465 = vmax.f32 %v361, %v433
    %v466 = vmax.f32 %v364, %v434
    %v467 = vmax.f32 %v369, %v435
    %v468 = vmax.f32 %v372, %v436
    %v469 = vmax.f32 %v377, %v437
    %v470 = vmax.f32 %v380, %v438
    %v471 = vmax.f32 %v385, %v439
    %v472 = vmax.f32 %v388, %v440
    %v473 = vmax.f32 %v393, %v441
    %v474 = vmax.f32 %v396, %v442
    %v475 = vmax.f32 %v401, %v443
    %v476 = vmax.f32 %v404, %v444
    %v477 = vmax.f32 %v409, %v445
    %v478 = vmax.f32 %v412, %v446
    %v479 = vpack.c.bf16 %v448, %v447
    %v480 = vpack.c.bf16 %v450, %v449
    %v481 = vpack.c.bf16 %v452, %v451
    %v482 = vpack.c.bf16 %v454, %v453
    %v483 = vpack.c.bf16 %v456, %v455
    %v484 = vpack.c.bf16 %v458, %v457
    %v485 = vpack.c.bf16 %v460, %v459
    %v486 = vpack.c.bf16 %v462, %v461
    %v487 = vpack.c.bf16 %v464, %v463
    %v488 = vpack.c.bf16 %v466, %v465
    %v489 = vpack.c.bf16 %v468, %v467
    %v490 = vpack.c.bf16 %v470, %v469
    %v491 = vpack.c.bf16 %v472, %v471
    %v492 = vpack.c.bf16 %v474, %v473
    %v493 = vpack.c.bf16 %v476, %v475
    %v494 = vpack.c.bf16 %v478, %v477
    %s495 = scalar_lea.vmem [#allocation5], 64
    %v496 = vld [vmem:[%s495] sm:$0xf]
    %v497 = vld [vmem:[%s495 + $0x4] sm:$0xf]
    %v498 = vld [vmem:[%s495 + $0x8] sm:$0xf]
    %v499 = vld [vmem:[%s495 + $0xc] sm:$0xf]
    %v500 = vld [vmem:[%s495 + $0x10] sm:$0xf]
    %v501 = vld [vmem:[%s495 + $0x14] sm:$0xf]
    %v502 = vld [vmem:[%s495 + $0x18] sm:$0xf]
    %v503 = vld [vmem:[%s495 + $0x1c] sm:$0xf]
    %v504 = vld [vmem:[%s495 + $0x20] sm:$0xf]
    %v505 = vld [vmem:[%s495 + $0x24] sm:$0xf]
    %v506 = vld [vmem:[%s495 + $0x28] sm:$0xf]
    %v507 = vld [vmem:[%s495 + $0x2c] sm:$0xf]
    %v508 = vld [vmem:[%s495 + $0x30] sm:$0xf]
    %v509 = vld [vmem:[%s495 + $0x34] sm:$0xf]
    %v510 = vld [vmem:[%s495 + $0x38] sm:$0xf]
    %v511 = vld [vmem:[%s495 + $0x3c] sm:$0xf]
    %v512 = vld [vmem:[#allocation7 + $0x1] sm:$0x1]
    %v513 = vlaneseq
    %v514 = vshrl.u32 %v513, 7
    %v515 = vsub.s32 0, %v514
    %v516 = vrot.slane %v512, %v515
    %v533 = vunpack.c.l.b16 %v496
    %v534 = vunpack.c.l.b16 %v497
    %v535 = vunpack.c.l.b16 %v498
    %v536 = vunpack.c.l.b16 %v499
    %v537 = vunpack.c.l.b16 %v500
    %v538 = vunpack.c.l.b16 %v501
    %v539 = vunpack.c.l.b16 %v502
    %v540 = vunpack.c.l.b16 %v503
    %v541 = vunpack.c.l.b16 %v504
    %v542 = vunpack.c.l.b16 %v505
    %v543 = vunpack.c.l.b16 %v506
    %v544 = vunpack.c.l.b16 %v507
    %v545 = vunpack.c.l.b16 %v508
    %v546 = vunpack.c.l.b16 %v509
    %v547 = vunpack.c.l.b16 %v510
    %v548 = vunpack.c.l.b16 %v511
    %v549 = vpack.c.b16 %v534, %v533
    %v550 = vpack.c.b16 %v536, %v535
    %v551 = vpack.c.b16 %v538, %v537
    %v552 = vpack.c.b16 %v540, %v539
    %v553 = vpack.c.b16 %v542, %v541
    %v554 = vpack.c.b16 %v544, %v543
    %v555 = vpack.c.b16 %v546, %v545
    %v556 = vpack.c.b16 %v548, %v547
    %565 = vmatprep.subr.bf16.mxu0 0
    %566 = vmatpush1.bf16.msra.mxu0 %v556
    %567 = vmatprep.subr.bf16.mxu0 0
    %568 = vmatpush1.bf16.msra.mxu0 %v555
    %569 = vmatprep.subr.bf16.mxu0 0
    %570 = vmatpush1.bf16.msra.mxu0 %v554
    %571 = vmatprep.subr.bf16.mxu0 0
    %572 = vmatpush1.bf16.msra.mxu0 %v553
    %573 = vmatprep.subr.bf16.mxu0 0
    %574 = vmatpush1.bf16.msra.mxu0 %v552
    %575 = vmatprep.subr.bf16.mxu0 0
    %576 = vmatpush1.bf16.msra.mxu0 %v551
    %577 = vmatprep.subr.bf16.mxu0 0
    %578 = vmatpush1.bf16.msra.mxu0 %v550
    %579 = vmatprep.subr.bf16.mxu0 0
    %580 = vmatpush1.bf16.msra.mxu0 %v549
    %581 = vmatprep.subr.bf16.mxu0 0
    %582 = vmatpush2.bf16.msra.mxu0 0
    %583 = vmatprep.subr.bf16.mxu0 0
    %584 = vmatpush2.bf16.msra.mxu0 0
    %585 = vmatprep.subr.bf16.mxu0 0
    %586 = vmatpush2.bf16.msra.mxu0 0
    %587 = vmatprep.subr.bf16.mxu0 0
    %588 = vmatpush2.bf16.msra.mxu0 0
    %589 = vmatprep.subr.bf16.mxu0 0
    %590 = vmatpush2.bf16.msra.mxu0 0
    %591 = vmatprep.subr.bf16.mxu0 0
    %592 = vmatpush2.bf16.msra.mxu0 0
    %593 = vmatprep.subr.bf16.mxu0 0
    %594 = vmatpush2.bf16.msra.mxu0 0
    %595 = vmatprep.subr.bf16.mxu0 0
    %596 = vmatpush2.bf16.msra.mxu0 0
    %597 = vmatprep.mubr.bf16.mxu0 0
    %598 = vmatmul.mubr.bf16.gmra.mxu0 %v479
    %v599 = vpop.f32.mrf.mxu0
    %v600 = vadd.f32 %v516, %v599
    %v601 = vpop.f32.mrf.mxu0
    %v602 = vpop.f32.mrf.mxu0
    %v603 = vadd.f32 %v516, %v602
    %v604 = vpop.f32.mrf.mxu0
    %605 = vmatprep.mubr.bf16.mxu0 0
    %606 = vmatmul.mubr.bf16.gmra.mxu0 %v480
    %v607 = vpop.f32.mrf.mxu0
    %v608 = vadd.f32 %v516, %v607
    %v609 = vpop.f32.mrf.mxu0
    %v610 = vpop.f32.mrf.mxu0
    %v611 = vadd.f32 %v516, %v610
    %v612 = vpop.f32.mrf.mxu0
    %613 = vmatprep.mubr.bf16.mxu0 0
    %614 = vmatmul.mubr.bf16.gmra.mxu0 %v481
    %v615 = vpop.f32.mrf.mxu0
    %v616 = vadd.f32 %v516, %v615
    %v617 = vpop.f32.mrf.mxu0
    %v618 = vpop.f32.mrf.mxu0
    %v619 = vadd.f32 %v516, %v618
    %v620 = vpop.f32.mrf.mxu0
    %621 = vmatprep.mubr.bf16.mxu0 0
    %622 = vmatmul.mubr.bf16.gmra.mxu0 %v482
    %v623 = vpop.f32.mrf.mxu0
    %v624 = vadd.f32 %v516, %v623
    %v625 = vpop.f32.mrf.mxu0
    %v626 = vpop.f32.mrf.mxu0
    %v627 = vadd.f32 %v516, %v626
    %v628 = vpop.f32.mrf.mxu0
    %629 = vmatprep.mubr.bf16.mxu0 0
    %630 = vmatmul.mubr.bf16.gmra.mxu0 %v483
    %v631 = vpop.f32.mrf.mxu0
    %v632 = vadd.f32 %v516, %v631
    %v633 = vpop.f32.mrf.mxu0
    %v634 = vpop.f32.mrf.mxu0
    %v635 = vadd.f32 %v516, %v634
    %v636 = vpop.f32.mrf.mxu0
    %637 = vmatprep.mubr.bf16.mxu0 0
    %638 = vmatmul.mubr.bf16.gmra.mxu0 %v484
    %v639 = vpop.f32.mrf.mxu0
    %v640 = vadd.f32 %v516, %v639
    %v641 = vpop.f32.mrf.mxu0
    %v642 = vpop.f32.mrf.mxu0
    %v643 = vadd.f32 %v516, %v642
    %v644 = vpop.f32.mrf.mxu0
    %645 = vmatprep.mubr.bf16.mxu0 0
    %646 = vmatmul.mubr.bf16.gmra.mxu0 %v485
    %v647 = vpop.f32.mrf.mxu0
    %v648 = vadd.f32 %v516, %v647
    %v649 = vpop.f32.mrf.mxu0
    %v650 = vpop.f32.mrf.mxu0
    %v651 = vadd.f32 %v516, %v650
    %v652 = vpop.f32.mrf.mxu0
    %653 = vmatprep.mubr.bf16.mxu0 0
    %654 = vmatmul.mubr.bf16.gmra.mxu0 %v486
    %v655 = vpop.f32.mrf.mxu0
    %v656 = vadd.f32 %v516, %v655
    %v657 = vpop.f32.mrf.mxu0
    %v658 = vpop.f32.mrf.mxu0
    %v659 = vadd.f32 %v516, %v658
    %v660 = vpop.f32.mrf.mxu0
    %661 = vmatprep.mubr.bf16.mxu0 0
    %662 = vmatmul.mubr.bf16.gmra.mxu0 %v487
    %v663 = vpop.f32.mrf.mxu0
    %v664 = vadd.f32 %v516, %v663
    %v665 = vpop.f32.mrf.mxu0
    %v666 = vpop.f32.mrf.mxu0
    %v667 = vadd.f32 %v516, %v666
    %v668 = vpop.f32.mrf.mxu0
    %669 = vmatprep.mubr.bf16.mxu0 0
    %670 = vmatmul.mubr.bf16.gmra.mxu0 %v488
    %v671 = vpop.f32.mrf.mxu0
    %v672 = vadd.f32 %v516, %v671
    %v673 = vpop.f32.mrf.mxu0
    %v674 = vpop.f32.mrf.mxu0
    %v675 = vadd.f32 %v516, %v674
    %v676 = vpop.f32.mrf.mxu0
    %677 = vmatprep.mubr.bf16.mxu0 0
    %678 = vmatmul.mubr.bf16.gmra.mxu0 %v489
    %v679 = vpop.f32.mrf.mxu0
    %v680 = vadd.f32 %v516, %v679
    %v681 = vpop.f32.mrf.mxu0
    %v682 = vpop.f32.mrf.mxu0
    %v683 = vadd.f32 %v516, %v682
    %v684 = vpop.f32.mrf.mxu0
    %685 = vmatprep.mubr.bf16.mxu0 0
    %686 = vmatmul.mubr.bf16.gmra.mxu0 %v490
    %v687 = vpop.f32.mrf.mxu0
    %v688 = vadd.f32 %v516, %v687
    %v689 = vpop.f32.mrf.mxu0
    %v690 = vpop.f32.mrf.mxu0
    %v691 = vadd.f32 %v516, %v690
    %v692 = vpop.f32.mrf.mxu0
    %693 = vmatprep.mubr.bf16.mxu0 0
    %694 = vmatmul.mubr.bf16.gmra.mxu0 %v491
    %v695 = vpop.f32.mrf.mxu0
    %v696 = vadd.f32 %v516, %v695
    %v697 = vpop.f32.mrf.mxu0
    %v698 = vpop.f32.mrf.mxu0
    %v699 = vadd.f32 %v516, %v698
    %v700 = vpop.f32.mrf.mxu0
    %701 = vmatprep.mubr.bf16.mxu0 0
    %702 = vmatmul.mubr.bf16.gmra.mxu0 %v492
    %v703 = vpop.f32.mrf.mxu0
    %v704 = vadd.f32 %v516, %v703
    %v705 = vpop.f32.mrf.mxu0
    %v706 = vpop.f32.mrf.mxu0
    %v707 = vadd.f32 %v516, %v706
    %v708 = vpop.f32.mrf.mxu0
    %709 = vmatprep.mubr.bf16.mxu0 0
    %710 = vmatmul.mubr.bf16.gmra.mxu0 %v493
    %v711 = vpop.f32.mrf.mxu0
    %v712 = vadd.f32 %v516, %v711
    %v713 = vpop.f32.mrf.mxu0
    %v714 = vpop.f32.mrf.mxu0
    %v715 = vadd.f32 %v516, %v714
    %v716 = vpop.f32.mrf.mxu0
    %717 = vmatprep.mubr.bf16.mxu0 0
    %718 = vmatmul.mubr.bf16.gmra.mxu0 %v494
    %v719 = vpop.f32.mrf.mxu0
    %v720 = vadd.f32 %v516, %v719
    %v721 = vpop.f32.mrf.mxu0
    %v722 = vpop.f32.mrf.mxu0
    %v723 = vadd.f32 %v516, %v722
    %v724 = vpop.f32.mrf.mxu0
    %725 = vdwg.mxu0
    %v726 = vmul.f32 %v600, 0.01
    %v727 = vmul.f32 %v603, 0.01
    %v728 = vmul.f32 %v608, 0.01
    %v729 = vmul.f32 %v611, 0.01
    %v730 = vmul.f32 %v616, 0.01
    %v731 = vmul.f32 %v619, 0.01
    %v732 = vmul.f32 %v624, 0.01
    %v733 = vmul.f32 %v627, 0.01
    %v734 = vmul.f32 %v632, 0.01
    %v735 = vmul.f32 %v635, 0.01
    %v736 = vmul.f32 %v640, 0.01
    %v737 = vmul.f32 %v643, 0.01
    %v738 = vmul.f32 %v648, 0.01
    %v739 = vmul.f32 %v651, 0.01
    %v740 = vmul.f32 %v656, 0.01
    %v741 = vmul.f32 %v659, 0.01
    %v742 = vmul.f32 %v664, 0.01
    %v743 = vmul.f32 %v667, 0.01
    %v744 = vmul.f32 %v672, 0.01
    %v745 = vmul.f32 %v675, 0.01
    %v746 = vmul.f32 %v680, 0.01
    %v747 = vmul.f32 %v683, 0.01
    %v748 = vmul.f32 %v688, 0.01
    %v749 = vmul.f32 %v691, 0.01
    %v750 = vmul.f32 %v696, 0.01
    %v751 = vmul.f32 %v699, 0.01
    %v752 = vmul.f32 %v704, 0.01
    %v753 = vmul.f32 %v707, 0.01
    %v754 = vmul.f32 %v712, 0.01
    %v755 = vmul.f32 %v715, 0.01
    %v756 = vmul.f32 %v720, 0.01
    %v757 = vmul.f32 %v723, 0.01
    %v758 = vmax.f32 %v600, %v726
    %v759 = vmax.f32 %v603, %v727
    %v760 = vmax.f32 %v608, %v728
    %v761 = vmax.f32 %v611, %v729
    %v762 = vmax.f32 %v616, %v730
    %v763 = vmax.f32 %v619, %v731
    %v764 = vmax.f32 %v624, %v732
    %v765 = vmax.f32 %v627, %v733
    %v766 = vmax.f32 %v632, %v734
    %v767 = vmax.f32 %v635, %v735
    %v768 = vmax.f32 %v640, %v736
    %v769 = vmax.f32 %v643, %v737
    %v770 = vmax.f32 %v648, %v738
    %v771 = vmax.f32 %v651, %v739
    %v772 = vmax.f32 %v656, %v740
    %v773 = vmax.f32 %v659, %v741
    %v774 = vmax.f32 %v664, %v742
    %v775 = vmax.f32 %v667, %v743
    %v776 = vmax.f32 %v672, %v744
    %v777 = vmax.f32 %v675, %v745
    %v778 = vmax.f32 %v680, %v746
    %v779 = vmax.f32 %v683, %v747
    %v780 = vmax.f32 %v688, %v748
    %v781 = vmax.f32 %v691, %v749
    %v782 = vmax.f32 %v696, %v750
    %v783 = vmax.f32 %v699, %v751
    %v784 = vmax.f32 %v704, %v752
    %v785 = vmax.f32 %v707, %v753
    %v786 = vmax.f32 %v712, %v754
    %v787 = vmax.f32 %v715, %v755
    %v788 = vmax.f32 %v720, %v756
    %v789 = vmax.f32 %v723, %v757
    %v790 = vadd.f32 %v758, %v759
    %v791 = vadd.f32 %v790, %v760
    %v792 = vadd.f32 %v791, %v761
    %v793 = vadd.f32 %v792, %v762
    %v794 = vadd.f32 %v793, %v763
    %v795 = vadd.f32 %v794, %v764
    %v796 = vadd.f32 %v795, %v765
    %v797 = vadd.f32 %v796, %v766
    %v798 = vadd.f32 %v797, %v767
    %v799 = vadd.f32 %v798, %v768
    %v800 = vadd.f32 %v799, %v769
    %v801 = vadd.f32 %v800, %v770
    %v802 = vadd.f32 %v801, %v771
    %v803 = vadd.f32 %v802, %v772
    %v804 = vadd.f32 %v803, %v773
    %v805 = vadd.f32 %v804, %v774
    %v806 = vadd.f32 %v805, %v775
    %v807 = vadd.f32 %v806, %v776
    %v808 = vadd.f32 %v807, %v777
    %v809 = vadd.f32 %v808, %v778
    %v810 = vadd.f32 %v809, %v779
    %v811 = vadd.f32 %v810, %v780
    %v812 = vadd.f32 %v811, %v781
    %v813 = vadd.f32 %v812, %v782
    %v814 = vadd.f32 %v813, %v783
    %v815 = vadd.f32 %v814, %v784
    %v816 = vadd.f32 %v815, %v785
    %v817 = vadd.f32 %v816, %v786
    %v818 = vadd.f32 %v817, %v787
    %v819 = vadd.f32 %v818, %v788
    %v820 = vadd.f32 %v819, %v789
    %v821 = vrot.slane %v820, 4
    %v822 = vadd.f32 %v820, %v821
    %v823 = vrot.slane %v822, 2
    %v824 = vadd.f32 %v822, %v823
    %v825 = vrot.slane %v824, 1
    %v826 = vadd.f32 %v824, %v825
    %v827 = vmul.f32 %v758, %v758
    %v828 = vmul.f32 %v759, %v759
    %v829 = vmul.f32 %v760, %v760
    %v830 = vmul.f32 %v761, %v761
    %v831 = vmul.f32 %v762, %v762
    %v832 = vmul.f32 %v763, %v763
    %v833 = vmul.f32 %v764, %v764
    %v834 = vmul.f32 %v765, %v765
    %v835 = vmul.f32 %v766, %v766
    %v836 = vmul.f32 %v767, %v767
    %v837 = vmul.f32 %v768, %v768
    %v838 = vmul.f32 %v769, %v769
    %v839 = vmul.f32 %v770, %v770
    %v840 = vmul.f32 %v771, %v771
    %v841 = vmul.f32 %v772, %v772
    %v842 = vmul.f32 %v773, %v773
    %v843 = vmul.f32 %v774, %v774
    %v844 = vmul.f32 %v775, %v775
    %v845 = vmul.f32 %v776, %v776
    %v846 = vmul.f32 %v777, %v777
    %v847 = vmul.f32 %v778, %v778
    %v848 = vmul.f32 %v779, %v779
    %v849 = vmul.f32 %v780, %v780
    %v850 = vmul.f32 %v781, %v781
    %v851 = vmul.f32 %v782, %v782
    %v852 = vmul.f32 %v783, %v783
    %v853 = vmul.f32 %v784, %v784
    %v854 = vmul.f32 %v785, %v785
    %v855 = vmul.f32 %v786, %v786
    %v856 = vmul.f32 %v787, %v787
    %v857 = vmul.f32 %v788, %v788
    %v858 = vmul.f32 %v789, %v789
    %v859 = vadd.f32 %v827, %v828
    %v860 = vadd.f32 %v859, %v829
    %v861 = vadd.f32 %v860, %v830
    %v862 = vadd.f32 %v861, %v831
    %v863 = vadd.f32 %v862, %v832
    %v864 = vadd.f32 %v863, %v833
    %v865 = vadd.f32 %v864, %v834
    %v866 = vadd.f32 %v865, %v835
    %v867 = vadd.f32 %v866, %v836
    %v868 = vadd.f32 %v867, %v837
    %v869 = vadd.f32 %v868, %v838
    %v870 = vadd.f32 %v869, %v839
    %v871 = vadd.f32 %v870, %v840
    %v872 = vadd.f32 %v871, %v841
    %v873 = vadd.f32 %v872, %v842
    %v874 = vadd.f32 %v873, %v843
    %v875 = vadd.f32 %v874, %v844
    %v876 = vadd.f32 %v875, %v845
    %v877 = vadd.f32 %v876, %v846
    %v878 = vadd.f32 %v877, %v847
    %v879 = vadd.f32 %v878, %v848
    %v880 = vadd.f32 %v879, %v849
    %v881 = vadd.f32 %v880, %v850
    %v882 = vadd.f32 %v881, %v851
    %v883 = vadd.f32 %v882, %v852
    %v884 = vadd.f32 %v883, %v853
    %v885 = vadd.f32 %v884, %v854
    %v886 = vadd.f32 %v885, %v855
    %v887 = vadd.f32 %v886, %v856
    %v888 = vadd.f32 %v887, %v857
    %v889 = vadd.f32 %v888, %v858
    %v890 = vrot.slane %v889, 4
    %v891 = vadd.f32 %v889, %v890
    %v892 = vrot.slane %v891, 2
    %v893 = vadd.f32 %v891, %v892
    %v894 = vrot.slane %v893, 1
    %v895 = vadd.f32 %v893, %v894
    %v896 = vmul.f32 %v826, 0.00390625
    %v897 = vmul.f32 %v895, 0.00390625
    %v898 = vmul.f32 %v896, %v896
    %v899 = vsub.f32 %v897, %v898
    %v900 = vmax.f32 %v899, 0.0
    %v901 = vadd.f32 %v900, 1e-05
    %v902 = vrsqrt.pop %v901
    %v903 = vld [vmem:[#allocation7 + $0x5] sm:$0x1]
    %v904 = vmul.f32 %v902, %v903
    %v905 = vld [vmem:[#allocation7 + $0x9] sm:$0x1]
    %v906 = vmul.f32 %v896, %v904
    %v907 = vsub.f32 %v905, %v906
    %v908 = vlaneseq
    %v909 = vshrl.u32 %v908, 7
    %v910 = vsub.s32 0, %v909
    %v911 = vrot.slane %v904, %v910
    %v912 = vmul.f32 %v758, %v911
    %v913 = vmul.f32 %v759, %v911
    %v914 = vmul.f32 %v760, %v911
    %v915 = vmul.f32 %v761, %v911
    %v916 = vmul.f32 %v762, %v911
    %v917 = vmul.f32 %v763, %v911
    %v918 = vmul.f32 %v764, %v911
    %v919 = vmul.f32 %v765, %v911
    %v920 = vmul.f32 %v766, %v911
    %v921 = vmul.f32 %v767, %v911
    %v922 = vmul.f32 %v768, %v911
    %v923 = vmul.f32 %v769, %v911
    %v924 = vmul.f32 %v770, %v911
    %v925 = vmul.f32 %v771, %v911
    %v926 = vmul.f32 %v772, %v911
    %v927 = vmul.f32 %v773, %v911
    %v928 = vmul.f32 %v774, %v911
    %v929 = vmul.f32 %v775, %v911
    %v930 = vmul.f32 %v776, %v911
    %v931 = vmul.f32 %v777, %v911
    %v932 = vmul.f32 %v778, %v911
    %v933 = vmul.f32 %v779, %v911
    %v934 = vmul.f32 %v780, %v911
    %v935 = vmul.f32 %v781, %v911
    %v936 = vmul.f32 %v782, %v911
    %v937 = vmul.f32 %v783, %v911
    %v938 = vmul.f32 %v784, %v911
    %v939 = vmul.f32 %v785, %v911
    %v940 = vmul.f32 %v786, %v911
    %v941 = vmul.f32 %v787, %v911
    %v942 = vmul.f32 %v788, %v911
    %v943 = vmul.f32 %v789, %v911
    %v944 = vlaneseq
    %v945 = vshrl.u32 %v944, 7
    %v946 = vsub.s32 0, %v945
    %v947 = vrot.slane %v907, %v946
    %v948 = vadd.f32 %v912, %v947
    %v949 = vadd.f32 %v913, %v947
    %v950 = vadd.f32 %v914, %v947
    %v951 = vadd.f32 %v915, %v947
    %v952 = vadd.f32 %v916, %v947
    %v953 = vadd.f32 %v917, %v947
    %v954 = vadd.f32 %v918, %v947
    %v955 = vadd.f32 %v919, %v947
    %v956 = vadd.f32 %v920, %v947
    %v957 = vadd.f32 %v921, %v947
    %v958 = vadd.f32 %v922, %v947
    %v959 = vadd.f32 %v923, %v947
    %v960 = vadd.f32 %v924, %v947
    %v961 = vadd.f32 %v925, %v947
    %v962 = vadd.f32 %v926, %v947
    %v963 = vadd.f32 %v927, %v947
    %v964 = vadd.f32 %v928, %v947
    %v965 = vadd.f32 %v929, %v947
    %v966 = vadd.f32 %v930, %v947
    %v967 = vadd.f32 %v931, %v947
    %v968 = vadd.f32 %v932, %v947
    %v969 = vadd.f32 %v933, %v947
    %v970 = vadd.f32 %v934, %v947
    %v971 = vadd.f32 %v935, %v947
    %v972 = vadd.f32 %v936, %v947
    %v973 = vadd.f32 %v937, %v947
    %v974 = vadd.f32 %v938, %v947
    %v975 = vadd.f32 %v939, %v947
    %v976 = vadd.f32 %v940, %v947
    %v977 = vadd.f32 %v941, %v947
    %v978 = vadd.f32 %v942, %v947
    %v979 = vadd.f32 %v943, %v947
    %v980 = vpack.c.bf16 %v949, %v948
    %v981 = vpack.c.bf16 %v951, %v950
    %v982 = vpack.c.bf16 %v953, %v952
    %v983 = vpack.c.bf16 %v955, %v954
    %v984 = vpack.c.bf16 %v957, %v956
    %v985 = vpack.c.bf16 %v959, %v958
    %v986 = vpack.c.bf16 %v961, %v960
    %v987 = vpack.c.bf16 %v963, %v962
    %v988 = vpack.c.bf16 %v965, %v964
    %v989 = vpack.c.bf16 %v967, %v966
    %v990 = vpack.c.bf16 %v969, %v968
    %v991 = vpack.c.bf16 %v971, %v970
    %v992 = vpack.c.bf16 %v973, %v972
    %v993 = vpack.c.bf16 %v975, %v974
    %v994 = vpack.c.bf16 %v977, %v976
    %v995 = vpack.c.bf16 %v979, %v978
    %s996 = scalar_lea.vmem [#allocation5], 128
    %v997 = vld [vmem:[%s996] sm:$0xf]
    %v998 = vld [vmem:[%s996 + $0x4] sm:$0xf]
    %v999 = vld [vmem:[%s996 + $0x8] sm:$0xf]
    %v1000 = vld [vmem:[%s996 + $0xc] sm:$0xf]
    %v1001 = vld [vmem:[%s996 + $0x10] sm:$0xf]
    %v1002 = vld [vmem:[%s996 + $0x14] sm:$0xf]
    %v1003 = vld [vmem:[%s996 + $0x18] sm:$0xf]
    %v1004 = vld [vmem:[%s996 + $0x1c] sm:$0xf]
    %v1005 = vld [vmem:[%s996 + $0x20] sm:$0xf]
    %v1006 = vld [vmem:[%s996 + $0x24] sm:$0xf]
    %v1007 = vld [vmem:[%s996 + $0x28] sm:$0xf]
    %v1008 = vld [vmem:[%s996 + $0x2c] sm:$0xf]
    %v1009 = vld [vmem:[%s996 + $0x30] sm:$0xf]
    %v1010 = vld [vmem:[%s996 + $0x34] sm:$0xf]
    %v1011 = vld [vmem:[%s996 + $0x38] sm:$0xf]
    %v1012 = vld [vmem:[%s996 + $0x3c] sm:$0xf]
    %v1013 = vld [vmem:[#allocation7 + $0x2] sm:$0x1]
    %v1014 = vlaneseq
    %v1015 = vshrl.u32 %v1014, 7
    %v1016 = vsub.s32 0, %v1015
    %v1017 = vrot.slane %v1013, %v1016
    %v1034 = vunpack.c.l.b16 %v997
    %v1035 = vunpack.c.l.b16 %v998
    %v1036 = vunpack.c.l.b16 %v999
    %v1037 = vunpack.c.l.b16 %v1000
    %v1038 = vunpack.c.l.b16 %v1001
    %v1039 = vunpack.c.l.b16 %v1002
    %v1040 = vunpack.c.l.b16 %v1003
    %v1041 = vunpack.c.l.b16 %v1004
    %v1042 = vunpack.c.l.b16 %v1005
    %v1043 = vunpack.c.l.b16 %v1006
    %v1044 = vunpack.c.l.b16 %v1007
    %v1045 = vunpack.c.l.b16 %v1008
    %v1046 = vunpack.c.l.b16 %v1009
    %v1047 = vunpack.c.l.b16 %v1010
    %v1048 = vunpack.c.l.b16 %v1011
    %v1049 = vunpack.c.l.b16 %v1012
    %v1050 = vpack.c.b16 %v1035, %v1034
    %v1051 = vpack.c.b16 %v1037, %v1036
    %v1052 = vpack.c.b16 %v1039, %v1038
    %v1053 = vpack.c.b16 %v1041, %v1040
    %v1054 = vpack.c.b16 %v1043, %v1042
    %v1055 = vpack.c.b16 %v1045, %v1044
    %v1056 = vpack.c.b16 %v1047, %v1046
    %v1057 = vpack.c.b16 %v1049, %v1048
    %1066 = vmatprep.subr.bf16.mxu0 0
    %1067 = vmatpush1.bf16.msra.mxu0 %v1057
    %1068 = vmatprep.subr.bf16.mxu0 0
    %1069 = vmatpush1.bf16.msra.mxu0 %v1056
    %1070 = vmatprep.subr.bf16.mxu0 0
    %1071 = vmatpush1.bf16.msra.mxu0 %v1055
    %1072 = vmatprep.subr.bf16.mxu0 0
    %1073 = vmatpush1.bf16.msra.mxu0 %v1054
    %1074 = vmatprep.subr.bf16.mxu0 0
    %1075 = vmatpush1.bf16.msra.mxu0 %v1053
    %1076 = vmatprep.subr.bf16.mxu0 0
    %1077 = vmatpush1.bf16.msra.mxu0 %v1052
    %1078 = vmatprep.subr.bf16.mxu0 0
    %1079 = vmatpush1.bf16.msra.mxu0 %v1051
    %1080 = vmatprep.subr.bf16.mxu0 0
    %1081 = vmatpush1.bf16.msra.mxu0 %v1050
    %1082 = vmatprep.subr.bf16.mxu0 0
    %1083 = vmatpush2.bf16.msra.mxu0 0
    %1084 = vmatprep.subr.bf16.mxu0 0
    %1085 = vmatpush2.bf16.msra.mxu0 0
    %1086 = vmatprep.subr.bf16.mxu0 0
    %1087 = vmatpush2.bf16.msra.mxu0 0
    %1088 = vmatprep.subr.bf16.mxu0 0
    %1089 = vmatpush2.bf16.msra.mxu0 0
    %1090 = vmatprep.subr.bf16.mxu0 0
    %1091 = vmatpush2.bf16.msra.mxu0 0
    %1092 = vmatprep.subr.bf16.mxu0 0
    %1093 = vmatpush2.bf16.msra.mxu0 0
    %1094 = vmatprep.subr.bf16.mxu0 0
    %1095 = vmatpush2.bf16.msra.mxu0 0
    %1096 = vmatprep.subr.bf16.mxu0 0
    %1097 = vmatpush2.bf16.msra.mxu0 0
    %1098 = vmatprep.mubr.bf16.mxu0 0
    %1099 = vmatmul.mubr.bf16.gmra.mxu0 %v980
    %v1100 = vpop.f32.mrf.mxu0
    %v1101 = vadd.f32 %v1017, %v1100
    %v1102 = vpop.f32.mrf.mxu0
    %v1103 = vpop.f32.mrf.mxu0
    %v1104 = vadd.f32 %v1017, %v1103
    %v1105 = vpop.f32.mrf.mxu0
    %1106 = vmatprep.mubr.bf16.mxu0 0
    %1107 = vmatmul.mubr.bf16.gmra.mxu0 %v981
    %v1108 = vpop.f32.mrf.mxu0
    %v1109 = vadd.f32 %v1017, %v1108
    %v1110 = vpop.f32.mrf.mxu0
    %v1111 = vpop.f32.mrf.mxu0
    %v1112 = vadd.f32 %v1017, %v1111
    %v1113 = vpop.f32.mrf.mxu0
    %1114 = vmatprep.mubr.bf16.mxu0 0
    %1115 = vmatmul.mubr.bf16.gmra.mxu0 %v982
    %v1116 = vpop.f32.mrf.mxu0
    %v1117 = vadd.f32 %v1017, %v1116
    %v1118 = vpop.f32.mrf.mxu0
    %v1119 = vpop.f32.mrf.mxu0
    %v1120 = vadd.f32 %v1017, %v1119
    %v1121 = vpop.f32.mrf.mxu0
    %1122 = vmatprep.mubr.bf16.mxu0 0
    %1123 = vmatmul.mubr.bf16.gmra.mxu0 %v983
    %v1124 = vpop.f32.mrf.mxu0
    %v1125 = vadd.f32 %v1017, %v1124
    %v1126 = vpop.f32.mrf.mxu0
    %v1127 = vpop.f32.mrf.mxu0
    %v1128 = vadd.f32 %v1017, %v1127
    %v1129 = vpop.f32.mrf.mxu0
    %1130 = vmatprep.mubr.bf16.mxu0 0
    %1131 = vmatmul.mubr.bf16.gmra.mxu0 %v984
    %v1132 = vpop.f32.mrf.mxu0
    %v1133 = vadd.f32 %v1017, %v1132
    %v1134 = vpop.f32.mrf.mxu0
    %v1135 = vpop.f32.mrf.mxu0
    %v1136 = vadd.f32 %v1017, %v1135
    %v1137 = vpop.f32.mrf.mxu0
    %1138 = vmatprep.mubr.bf16.mxu0 0
    %1139 = vmatmul.mubr.bf16.gmra.mxu0 %v985
    %v1140 = vpop.f32.mrf.mxu0
    %v1141 = vadd.f32 %v1017, %v1140
    %v1142 = vpop.f32.mrf.mxu0
    %v1143 = vpop.f32.mrf.mxu0
    %v1144 = vadd.f32 %v1017, %v1143
    %v1145 = vpop.f32.mrf.mxu0
    %1146 = vmatprep.mubr.bf16.mxu0 0
    %1147 = vmatmul.mubr.bf16.gmra.mxu0 %v986
    %v1148 = vpop.f32.mrf.mxu0
    %v1149 = vadd.f32 %v1017, %v1148
    %v1150 = vpop.f32.mrf.mxu0
    %v1151 = vpop.f32.mrf.mxu0
    %v1152 = vadd.f32 %v1017, %v1151
    %v1153 = vpop.f32.mrf.mxu0
    %1154 = vmatprep.mubr.bf16.mxu0 0
    %1155 = vmatmul.mubr.bf16.gmra.mxu0 %v987
    %v1156 = vpop.f32.mrf.mxu0
    %v1157 = vadd.f32 %v1017, %v1156
    %v1158 = vpop.f32.mrf.mxu0
    %v1159 = vpop.f32.mrf.mxu0
    %v1160 = vadd.f32 %v1017, %v1159
    %v1161 = vpop.f32.mrf.mxu0
    %1162 = vmatprep.mubr.bf16.mxu0 0
    %1163 = vmatmul.mubr.bf16.gmra.mxu0 %v988
    %v1164 = vpop.f32.mrf.mxu0
    %v1165 = vadd.f32 %v1017, %v1164
    %v1166 = vpop.f32.mrf.mxu0
    %v1167 = vpop.f32.mrf.mxu0
    %v1168 = vadd.f32 %v1017, %v1167
    %v1169 = vpop.f32.mrf.mxu0
    %1170 = vmatprep.mubr.bf16.mxu0 0
    %1171 = vmatmul.mubr.bf16.gmra.mxu0 %v989
    %v1172 = vpop.f32.mrf.mxu0
    %v1173 = vadd.f32 %v1017, %v1172
    %v1174 = vpop.f32.mrf.mxu0
    %v1175 = vpop.f32.mrf.mxu0
    %v1176 = vadd.f32 %v1017, %v1175
    %v1177 = vpop.f32.mrf.mxu0
    %1178 = vmatprep.mubr.bf16.mxu0 0
    %1179 = vmatmul.mubr.bf16.gmra.mxu0 %v990
    %v1180 = vpop.f32.mrf.mxu0
    %v1181 = vadd.f32 %v1017, %v1180
    %v1182 = vpop.f32.mrf.mxu0
    %v1183 = vpop.f32.mrf.mxu0
    %v1184 = vadd.f32 %v1017, %v1183
    %v1185 = vpop.f32.mrf.mxu0
    %1186 = vmatprep.mubr.bf16.mxu0 0
    %1187 = vmatmul.mubr.bf16.gmra.mxu0 %v991
    %v1188 = vpop.f32.mrf.mxu0
    %v1189 = vadd.f32 %v1017, %v1188
    %v1190 = vpop.f32.mrf.mxu0
    %v1191 = vpop.f32.mrf.mxu0
    %v1192 = vadd.f32 %v1017, %v1191
    %v1193 = vpop.f32.mrf.mxu0
    %1194 = vmatprep.mubr.bf16.mxu0 0
    %1195 = vmatmul.mubr.bf16.gmra.mxu0 %v992
    %v1196 = vpop.f32.mrf.mxu0
    %v1197 = vadd.f32 %v1017, %v1196
    %v1198 = vpop.f32.mrf.mxu0
    %v1199 = vpop.f32.mrf.mxu0
    %v1200 = vadd.f32 %v1017, %v1199
    %v1201 = vpop.f32.mrf.mxu0
    %1202 = vmatprep.mubr.bf16.mxu0 0
    %1203 = vmatmul.mubr.bf16.gmra.mxu0 %v993
    %v1204 = vpop.f32.mrf.mxu0
    %v1205 = vadd.f32 %v1017, %v1204
    %v1206 = vpop.f32.mrf.mxu0
    %v1207 = vpop.f32.mrf.mxu0
    %v1208 = vadd.f32 %v1017, %v1207
    %v1209 = vpop.f32.mrf.mxu0
    %1210 = vmatprep.mubr.bf16.mxu0 0
    %1211 = vmatmul.mubr.bf16.gmra.mxu0 %v994
    %v1212 = vpop.f32.mrf.mxu0
    %v1213 = vadd.f32 %v1017, %v1212
    %v1214 = vpop.f32.mrf.mxu0
    %v1215 = vpop.f32.mrf.mxu0
    %v1216 = vadd.f32 %v1017, %v1215
    %v1217 = vpop.f32.mrf.mxu0
    %1218 = vmatprep.mubr.bf16.mxu0 0
    %1219 = vmatmul.mubr.bf16.gmra.mxu0 %v995
    %v1220 = vpop.f32.mrf.mxu0
    %v1221 = vadd.f32 %v1017, %v1220
    %v1222 = vpop.f32.mrf.mxu0
    %v1223 = vpop.f32.mrf.mxu0
    %v1224 = vadd.f32 %v1017, %v1223
    %v1225 = vpop.f32.mrf.mxu0
    %1226 = vdwg.mxu0
    %v1227 = vmul.f32 %v1101, 0.01
    %v1228 = vmul.f32 %v1104, 0.01
    %v1229 = vmul.f32 %v1109, 0.01
    %v1230 = vmul.f32 %v1112, 0.01
    %v1231 = vmul.f32 %v1117, 0.01
    %v1232 = vmul.f32 %v1120, 0.01
    %v1233 = vmul.f32 %v1125, 0.01
    %v1234 = vmul.f32 %v1128, 0.01
    %v1235 = vmul.f32 %v1133, 0.01
    %v1236 = vmul.f32 %v1136, 0.01
    %v1237 = vmul.f32 %v1141, 0.01
    %v1238 = vmul.f32 %v1144, 0.01
    %v1239 = vmul.f32 %v1149, 0.01
    %v1240 = vmul.f32 %v1152, 0.01
    %v1241 = vmul.f32 %v1157, 0.01
    %v1242 = vmul.f32 %v1160, 0.01
    %v1243 = vmul.f32 %v1165, 0.01
    %v1244 = vmul.f32 %v1168, 0.01
    %v1245 = vmul.f32 %v1173, 0.01
    %v1246 = vmul.f32 %v1176, 0.01
    %v1247 = vmul.f32 %v1181, 0.01
    %v1248 = vmul.f32 %v1184, 0.01
    %v1249 = vmul.f32 %v1189, 0.01
    %v1250 = vmul.f32 %v1192, 0.01
    %v1251 = vmul.f32 %v1197, 0.01
    %v1252 = vmul.f32 %v1200, 0.01
    %v1253 = vmul.f32 %v1205, 0.01
    %v1254 = vmul.f32 %v1208, 0.01
    %v1255 = vmul.f32 %v1213, 0.01
    %v1256 = vmul.f32 %v1216, 0.01
    %v1257 = vmul.f32 %v1221, 0.01
    %v1258 = vmul.f32 %v1224, 0.01
    %v1259 = vmax.f32 %v1101, %v1227
    %v1260 = vmax.f32 %v1104, %v1228
    %v1261 = vmax.f32 %v1109, %v1229
    %v1262 = vmax.f32 %v1112, %v1230
    %v1263 = vmax.f32 %v1117, %v1231
    %v1264 = vmax.f32 %v1120, %v1232
    %v1265 = vmax.f32 %v1125, %v1233
    %v1266 = vmax.f32 %v1128, %v1234
    %v1267 = vmax.f32 %v1133, %v1235
    %v1268 = vmax.f32 %v1136, %v1236
    %v1269 = vmax.f32 %v1141, %v1237
    %v1270 = vmax.f32 %v1144, %v1238
    %v1271 = vmax.f32 %v1149, %v1239
    %v1272 = vmax.f32 %v1152, %v1240
    %v1273 = vmax.f32 %v1157, %v1241
    %v1274 = vmax.f32 %v1160, %v1242
    %v1275 = vmax.f32 %v1165, %v1243
    %v1276 = vmax.f32 %v1168, %v1244
    %v1277 = vmax.f32 %v1173, %v1245
    %v1278 = vmax.f32 %v1176, %v1246
    %v1279 = vmax.f32 %v1181, %v1247
    %v1280 = vmax.f32 %v1184, %v1248
    %v1281 = vmax.f32 %v1189, %v1249
    %v1282 = vmax.f32 %v1192, %v1250
    %v1283 = vmax.f32 %v1197, %v1251
    %v1284 = vmax.f32 %v1200, %v1252
    %v1285 = vmax.f32 %v1205, %v1253
    %v1286 = vmax.f32 %v1208, %v1254
    %v1287 = vmax.f32 %v1213, %v1255
    %v1288 = vmax.f32 %v1216, %v1256
    %v1289 = vmax.f32 %v1221, %v1257
    %v1290 = vmax.f32 %v1224, %v1258
    %v1291 = vadd.f32 %v1259, %v1260
    %v1292 = vadd.f32 %v1291, %v1261
    %v1293 = vadd.f32 %v1292, %v1262
    %v1294 = vadd.f32 %v1293, %v1263
    %v1295 = vadd.f32 %v1294, %v1264
    %v1296 = vadd.f32 %v1295, %v1265
    %v1297 = vadd.f32 %v1296, %v1266
    %v1298 = vadd.f32 %v1297, %v1267
    %v1299 = vadd.f32 %v1298, %v1268
    %v1300 = vadd.f32 %v1299, %v1269
    %v1301 = vadd.f32 %v1300, %v1270
    %v1302 = vadd.f32 %v1301, %v1271
    %v1303 = vadd.f32 %v1302, %v1272
    %v1304 = vadd.f32 %v1303, %v1273
    %v1305 = vadd.f32 %v1304, %v1274
    %v1306 = vadd.f32 %v1305, %v1275
    %v1307 = vadd.f32 %v1306, %v1276
    %v1308 = vadd.f32 %v1307, %v1277
    %v1309 = vadd.f32 %v1308, %v1278
    %v1310 = vadd.f32 %v1309, %v1279
    %v1311 = vadd.f32 %v1310, %v1280
    %v1312 = vadd.f32 %v1311, %v1281
    %v1313 = vadd.f32 %v1312, %v1282
    %v1314 = vadd.f32 %v1313, %v1283
    %v1315 = vadd.f32 %v1314, %v1284
    %v1316 = vadd.f32 %v1315, %v1285
    %v1317 = vadd.f32 %v1316, %v1286
    %v1318 = vadd.f32 %v1317, %v1287
    %v1319 = vadd.f32 %v1318, %v1288
    %v1320 = vadd.f32 %v1319, %v1289
    %v1321 = vadd.f32 %v1320, %v1290
    %v1322 = vrot.slane %v1321, 4
    %v1323 = vadd.f32 %v1321, %v1322
    %v1324 = vrot.slane %v1323, 2
    %v1325 = vadd.f32 %v1323, %v1324
    %v1326 = vrot.slane %v1325, 1
    %v1327 = vadd.f32 %v1325, %v1326
    %v1328 = vmul.f32 %v1259, %v1259
    %v1329 = vmul.f32 %v1260, %v1260
    %v1330 = vmul.f32 %v1261, %v1261
    %v1331 = vmul.f32 %v1262, %v1262
    %v1332 = vmul.f32 %v1263, %v1263
    %v1333 = vmul.f32 %v1264, %v1264
    %v1334 = vmul.f32 %v1265, %v1265
    %v1335 = vmul.f32 %v1266, %v1266
    %v1336 = vmul.f32 %v1267, %v1267
    %v1337 = vmul.f32 %v1268, %v1268
    %v1338 = vmul.f32 %v1269, %v1269
    %v1339 = vmul.f32 %v1270, %v1270
    %v1340 = vmul.f32 %v1271, %v1271
    %v1341 = vmul.f32 %v1272, %v1272
    %v1342 = vmul.f32 %v1273, %v1273
    %v1343 = vmul.f32 %v1274, %v1274
    %v1344 = vmul.f32 %v1275, %v1275
    %v1345 = vmul.f32 %v1276, %v1276
    %v1346 = vmul.f32 %v1277, %v1277
    %v1347 = vmul.f32 %v1278, %v1278
    %v1348 = vmul.f32 %v1279, %v1279
    %v1349 = vmul.f32 %v1280, %v1280
    %v1350 = vmul.f32 %v1281, %v1281
    %v1351 = vmul.f32 %v1282, %v1282
    %v1352 = vmul.f32 %v1283, %v1283
    %v1353 = vmul.f32 %v1284, %v1284
    %v1354 = vmul.f32 %v1285, %v1285
    %v1355 = vmul.f32 %v1286, %v1286
    %v1356 = vmul.f32 %v1287, %v1287
    %v1357 = vmul.f32 %v1288, %v1288
    %v1358 = vmul.f32 %v1289, %v1289
    %v1359 = vmul.f32 %v1290, %v1290
    %v1360 = vadd.f32 %v1328, %v1329
    %v1361 = vadd.f32 %v1360, %v1330
    %v1362 = vadd.f32 %v1361, %v1331
    %v1363 = vadd.f32 %v1362, %v1332
    %v1364 = vadd.f32 %v1363, %v1333
    %v1365 = vadd.f32 %v1364, %v1334
    %v1366 = vadd.f32 %v1365, %v1335
    %v1367 = vadd.f32 %v1366, %v1336
    %v1368 = vadd.f32 %v1367, %v1337
    %v1369 = vadd.f32 %v1368, %v1338
    %v1370 = vadd.f32 %v1369, %v1339
    %v1371 = vadd.f32 %v1370, %v1340
    %v1372 = vadd.f32 %v1371, %v1341
    %v1373 = vadd.f32 %v1372, %v1342
    %v1374 = vadd.f32 %v1373, %v1343
    %v1375 = vadd.f32 %v1374, %v1344
    %v1376 = vadd.f32 %v1375, %v1345
    %v1377 = vadd.f32 %v1376, %v1346
    %v1378 = vadd.f32 %v1377, %v1347
    %v1379 = vadd.f32 %v1378, %v1348
    %v1380 = vadd.f32 %v1379, %v1349
    %v1381 = vadd.f32 %v1380, %v1350
    %v1382 = vadd.f32 %v1381, %v1351
    %v1383 = vadd.f32 %v1382, %v1352
    %v1384 = vadd.f32 %v1383, %v1353
    %v1385 = vadd.f32 %v1384, %v1354
    %v1386 = vadd.f32 %v1385, %v1355
    %v1387 = vadd.f32 %v1386, %v1356
    %v1388 = vadd.f32 %v1387, %v1357
    %v1389 = vadd.f32 %v1388, %v1358
    %v1390 = vadd.f32 %v1389, %v1359
    %v1391 = vrot.slane %v1390, 4
    %v1392 = vadd.f32 %v1390, %v1391
    %v1393 = vrot.slane %v1392, 2
    %v1394 = vadd.f32 %v1392, %v1393
    %v1395 = vrot.slane %v1394, 1
    %v1396 = vadd.f32 %v1394, %v1395
    %v1397 = vmul.f32 %v1327, 0.00390625
    %v1398 = vmul.f32 %v1396, 0.00390625
    %v1399 = vmul.f32 %v1397, %v1397
    %v1400 = vsub.f32 %v1398, %v1399
    %v1401 = vmax.f32 %v1400, 0.0
    %v1402 = vadd.f32 %v1401, 1e-05
    %v1403 = vrsqrt.pop %v1402
    %v1404 = vld [vmem:[#allocation7 + $0x6] sm:$0x1]
    %v1405 = vmul.f32 %v1403, %v1404
    %v1406 = vld [vmem:[#allocation7 + $0xa] sm:$0x1]
    %v1407 = vmul.f32 %v1397, %v1405
    %v1408 = vsub.f32 %v1406, %v1407
    %v1409 = vlaneseq
    %v1410 = vshrl.u32 %v1409, 7
    %v1411 = vsub.s32 0, %v1410
    %v1412 = vrot.slane %v1405, %v1411
    %v1413 = vmul.f32 %v1259, %v1412
    %v1414 = vmul.f32 %v1260, %v1412
    %v1415 = vmul.f32 %v1261, %v1412
    %v1416 = vmul.f32 %v1262, %v1412
    %v1417 = vmul.f32 %v1263, %v1412
    %v1418 = vmul.f32 %v1264, %v1412
    %v1419 = vmul.f32 %v1265, %v1412
    %v1420 = vmul.f32 %v1266, %v1412
    %v1421 = vmul.f32 %v1267, %v1412
    %v1422 = vmul.f32 %v1268, %v1412
    %v1423 = vmul.f32 %v1269, %v1412
    %v1424 = vmul.f32 %v1270, %v1412
    %v1425 = vmul.f32 %v1271, %v1412
    %v1426 = vmul.f32 %v1272, %v1412
    %v1427 = vmul.f32 %v1273, %v1412
    %v1428 = vmul.f32 %v1274, %v1412
    %v1429 = vmul.f32 %v1275, %v1412
    %v1430 = vmul.f32 %v1276, %v1412
    %v1431 = vmul.f32 %v1277, %v1412
    %v1432 = vmul.f32 %v1278, %v1412
    %v1433 = vmul.f32 %v1279, %v1412
    %v1434 = vmul.f32 %v1280, %v1412
    %v1435 = vmul.f32 %v1281, %v1412
    %v1436 = vmul.f32 %v1282, %v1412
    %v1437 = vmul.f32 %v1283, %v1412
    %v1438 = vmul.f32 %v1284, %v1412
    %v1439 = vmul.f32 %v1285, %v1412
    %v1440 = vmul.f32 %v1286, %v1412
    %v1441 = vmul.f32 %v1287, %v1412
    %v1442 = vmul.f32 %v1288, %v1412
    %v1443 = vmul.f32 %v1289, %v1412
    %v1444 = vmul.f32 %v1290, %v1412
    %v1445 = vlaneseq
    %v1446 = vshrl.u32 %v1445, 7
    %v1447 = vsub.s32 0, %v1446
    %v1448 = vrot.slane %v1408, %v1447
    %v1449 = vadd.f32 %v1413, %v1448
    %v1450 = vadd.f32 %v1414, %v1448
    %v1451 = vadd.f32 %v1415, %v1448
    %v1452 = vadd.f32 %v1416, %v1448
    %v1453 = vadd.f32 %v1417, %v1448
    %v1454 = vadd.f32 %v1418, %v1448
    %v1455 = vadd.f32 %v1419, %v1448
    %v1456 = vadd.f32 %v1420, %v1448
    %v1457 = vadd.f32 %v1421, %v1448
    %v1458 = vadd.f32 %v1422, %v1448
    %v1459 = vadd.f32 %v1423, %v1448
    %v1460 = vadd.f32 %v1424, %v1448
    %v1461 = vadd.f32 %v1425, %v1448
    %v1462 = vadd.f32 %v1426, %v1448
    %v1463 = vadd.f32 %v1427, %v1448
    %v1464 = vadd.f32 %v1428, %v1448
    %v1465 = vadd.f32 %v1429, %v1448
    %v1466 = vadd.f32 %v1430, %v1448
    %v1467 = vadd.f32 %v1431, %v1448
    %v1468 = vadd.f32 %v1432, %v1448
    %v1469 = vadd.f32 %v1433, %v1448
    %v1470 = vadd.f32 %v1434, %v1448
    %v1471 = vadd.f32 %v1435, %v1448
    %v1472 = vadd.f32 %v1436, %v1448
    %v1473 = vadd.f32 %v1437, %v1448
    %v1474 = vadd.f32 %v1438, %v1448
    %v1475 = vadd.f32 %v1439, %v1448
    %v1476 = vadd.f32 %v1440, %v1448
    %v1477 = vadd.f32 %v1441, %v1448
    %v1478 = vadd.f32 %v1442, %v1448
    %v1479 = vadd.f32 %v1443, %v1448
    %v1480 = vadd.f32 %v1444, %v1448
    %v1481 = vpack.c.bf16 %v1450, %v1449
    %v1482 = vpack.c.bf16 %v1452, %v1451
    %v1483 = vpack.c.bf16 %v1454, %v1453
    %v1484 = vpack.c.bf16 %v1456, %v1455
    %v1485 = vpack.c.bf16 %v1458, %v1457
    %v1486 = vpack.c.bf16 %v1460, %v1459
    %v1487 = vpack.c.bf16 %v1462, %v1461
    %v1488 = vpack.c.bf16 %v1464, %v1463
    %v1489 = vpack.c.bf16 %v1466, %v1465
    %v1490 = vpack.c.bf16 %v1468, %v1467
    %v1491 = vpack.c.bf16 %v1470, %v1469
    %v1492 = vpack.c.bf16 %v1472, %v1471
    %v1493 = vpack.c.bf16 %v1474, %v1473
    %v1494 = vpack.c.bf16 %v1476, %v1475
    %v1495 = vpack.c.bf16 %v1478, %v1477
    %v1496 = vpack.c.bf16 %v1480, %v1479
    %s1497 = scalar_lea.vmem [#allocation5], 192
    %v1498 = vld [vmem:[%s1497] sm:$0xf]
    %v1499 = vld [vmem:[%s1497 + $0x4] sm:$0xf]
    %v1500 = vld [vmem:[%s1497 + $0x8] sm:$0xf]
    %v1501 = vld [vmem:[%s1497 + $0xc] sm:$0xf]
    %v1502 = vld [vmem:[%s1497 + $0x10] sm:$0xf]
    %v1503 = vld [vmem:[%s1497 + $0x14] sm:$0xf]
    %v1504 = vld [vmem:[%s1497 + $0x18] sm:$0xf]
    %v1505 = vld [vmem:[%s1497 + $0x1c] sm:$0xf]
    %v1506 = vld [vmem:[%s1497 + $0x20] sm:$0xf]
    %v1507 = vld [vmem:[%s1497 + $0x24] sm:$0xf]
    %v1508 = vld [vmem:[%s1497 + $0x28] sm:$0xf]
    %v1509 = vld [vmem:[%s1497 + $0x2c] sm:$0xf]
    %v1510 = vld [vmem:[%s1497 + $0x30] sm:$0xf]
    %v1511 = vld [vmem:[%s1497 + $0x34] sm:$0xf]
    %v1512 = vld [vmem:[%s1497 + $0x38] sm:$0xf]
    %v1513 = vld [vmem:[%s1497 + $0x3c] sm:$0xf]
    %v1514 = vld [vmem:[#allocation7 + $0x3] sm:$0x1]
    %v1515 = vlaneseq
    %v1516 = vshrl.u32 %v1515, 7
    %v1517 = vsub.s32 0, %v1516
    %v1518 = vrot.slane %v1514, %v1517
    %v1535 = vunpack.c.l.b16 %v1498
    %v1536 = vunpack.c.l.b16 %v1499
    %v1537 = vunpack.c.l.b16 %v1500
    %v1538 = vunpack.c.l.b16 %v1501
    %v1539 = vunpack.c.l.b16 %v1502
    %v1540 = vunpack.c.l.b16 %v1503
    %v1541 = vunpack.c.l.b16 %v1504
    %v1542 = vunpack.c.l.b16 %v1505
    %v1543 = vunpack.c.l.b16 %v1506
    %v1544 = vunpack.c.l.b16 %v1507
    %v1545 = vunpack.c.l.b16 %v1508
    %v1546 = vunpack.c.l.b16 %v1509
    %v1547 = vunpack.c.l.b16 %v1510
    %v1548 = vunpack.c.l.b16 %v1511
    %v1549 = vunpack.c.l.b16 %v1512
    %v1550 = vunpack.c.l.b16 %v1513
    %v1551 = vpack.c.b16 %v1536, %v1535
    %v1552 = vpack.c.b16 %v1538, %v1537
    %v1553 = vpack.c.b16 %v1540, %v1539
    %v1554 = vpack.c.b16 %v1542, %v1541
    %v1555 = vpack.c.b16 %v1544, %v1543
    %v1556 = vpack.c.b16 %v1546, %v1545
    %v1557 = vpack.c.b16 %v1548, %v1547
    %v1558 = vpack.c.b16 %v1550, %v1549
    %1567 = vmatprep.subr.bf16.mxu0 0
    %1568 = vmatpush1.bf16.msra.mxu0 %v1558
    %1569 = vmatprep.subr.bf16.mxu0 0
    %1570 = vmatpush1.bf16.msra.mxu0 %v1557
    %1571 = vmatprep.subr.bf16.mxu0 0
    %1572 = vmatpush1.bf16.msra.mxu0 %v1556
    %1573 = vmatprep.subr.bf16.mxu0 0
    %1574 = vmatpush1.bf16.msra.mxu0 %v1555
    %1575 = vmatprep.subr.bf16.mxu0 0
    %1576 = vmatpush1.bf16.msra.mxu0 %v1554
    %1577 = vmatprep.subr.bf16.mxu0 0
    %1578 = vmatpush1.bf16.msra.mxu0 %v1553
    %1579 = vmatprep.subr.bf16.mxu0 0
    %1580 = vmatpush1.bf16.msra.mxu0 %v1552
    %1581 = vmatprep.subr.bf16.mxu0 0
    %1582 = vmatpush1.bf16.msra.mxu0 %v1551
    %1583 = vmatprep.subr.bf16.mxu0 0
    %1584 = vmatpush2.bf16.msra.mxu0 0
    %1585 = vmatprep.subr.bf16.mxu0 0
    %1586 = vmatpush2.bf16.msra.mxu0 0
    %1587 = vmatprep.subr.bf16.mxu0 0
    %1588 = vmatpush2.bf16.msra.mxu0 0
    %1589 = vmatprep.subr.bf16.mxu0 0
    %1590 = vmatpush2.bf16.msra.mxu0 0
    %1591 = vmatprep.subr.bf16.mxu0 0
    %1592 = vmatpush2.bf16.msra.mxu0 0
    %1593 = vmatprep.subr.bf16.mxu0 0
    %1594 = vmatpush2.bf16.msra.mxu0 0
    %1595 = vmatprep.subr.bf16.mxu0 0
    %1596 = vmatpush2.bf16.msra.mxu0 0
    %1597 = vmatprep.subr.bf16.mxu0 0
    %1598 = vmatpush2.bf16.msra.mxu0 0
    %1599 = vmatprep.mubr.bf16.mxu0 0
    %1600 = vmatmul.mubr.bf16.gmra.mxu0 %v1481
    %v1601 = vpop.f32.mrf.mxu0
    %v1602 = vadd.f32 %v1518, %v1601
    %v1603 = vpop.f32.mrf.mxu0
    %v1604 = vpop.f32.mrf.mxu0
    %v1605 = vadd.f32 %v1518, %v1604
    %v1606 = vpop.f32.mrf.mxu0
    %1607 = vmatprep.mubr.bf16.mxu0 0
    %1608 = vmatmul.mubr.bf16.gmra.mxu0 %v1482
    %v1609 = vpop.f32.mrf.mxu0
    %v1610 = vadd.f32 %v1518, %v1609
    %v1611 = vpop.f32.mrf.mxu0
    %v1612 = vpop.f32.mrf.mxu0
    %v1613 = vadd.f32 %v1518, %v1612
    %v1614 = vpop.f32.mrf.mxu0
    %1615 = vmatprep.mubr.bf16.mxu0 0
    %1616 = vmatmul.mubr.bf16.gmra.mxu0 %v1483
    %v1617 = vpop.f32.mrf.mxu0
    %v1618 = vadd.f32 %v1518, %v1617
    %v1619 = vpop.f32.mrf.mxu0
    %v1620 = vpop.f32.mrf.mxu0
    %v1621 = vadd.f32 %v1518, %v1620
    %v1622 = vpop.f32.mrf.mxu0
    %1623 = vmatprep.mubr.bf16.mxu0 0
    %1624 = vmatmul.mubr.bf16.gmra.mxu0 %v1484
    %v1625 = vpop.f32.mrf.mxu0
    %v1626 = vadd.f32 %v1518, %v1625
    %v1627 = vpop.f32.mrf.mxu0
    %v1628 = vpop.f32.mrf.mxu0
    %v1629 = vadd.f32 %v1518, %v1628
    %v1630 = vpop.f32.mrf.mxu0
    %1631 = vmatprep.mubr.bf16.mxu0 0
    %1632 = vmatmul.mubr.bf16.gmra.mxu0 %v1485
    %v1633 = vpop.f32.mrf.mxu0
    %v1634 = vadd.f32 %v1518, %v1633
    %v1635 = vpop.f32.mrf.mxu0
    %v1636 = vpop.f32.mrf.mxu0
    %v1637 = vadd.f32 %v1518, %v1636
    %v1638 = vpop.f32.mrf.mxu0
    %1639 = vmatprep.mubr.bf16.mxu0 0
    %1640 = vmatmul.mubr.bf16.gmra.mxu0 %v1486
    %v1641 = vpop.f32.mrf.mxu0
    %v1642 = vadd.f32 %v1518, %v1641
    %v1643 = vpop.f32.mrf.mxu0
    %v1644 = vpop.f32.mrf.mxu0
    %v1645 = vadd.f32 %v1518, %v1644
    %v1646 = vpop.f32.mrf.mxu0
    %1647 = vmatprep.mubr.bf16.mxu0 0
    %1648 = vmatmul.mubr.bf16.gmra.mxu0 %v1487
    %v1649 = vpop.f32.mrf.mxu0
    %v1650 = vadd.f32 %v1518, %v1649
    %v1651 = vpop.f32.mrf.mxu0
    %v1652 = vpop.f32.mrf.mxu0
    %v1653 = vadd.f32 %v1518, %v1652
    %v1654 = vpop.f32.mrf.mxu0
    %1655 = vmatprep.mubr.bf16.mxu0 0
    %1656 = vmatmul.mubr.bf16.gmra.mxu0 %v1488
    %v1657 = vpop.f32.mrf.mxu0
    %v1658 = vadd.f32 %v1518, %v1657
    %v1659 = vpop.f32.mrf.mxu0
    %v1660 = vpop.f32.mrf.mxu0
    %v1661 = vadd.f32 %v1518, %v1660
    %v1662 = vpop.f32.mrf.mxu0
    %1663 = vmatprep.mubr.bf16.mxu0 0
    %1664 = vmatmul.mubr.bf16.gmra.mxu0 %v1489
    %v1665 = vpop.f32.mrf.mxu0
    %v1666 = vadd.f32 %v1518, %v1665
    %v1667 = vpop.f32.mrf.mxu0
    %v1668 = vpop.f32.mrf.mxu0
    %v1669 = vadd.f32 %v1518, %v1668
    %v1670 = vpop.f32.mrf.mxu0
    %1671 = vmatprep.mubr.bf16.mxu0 0
    %1672 = vmatmul.mubr.bf16.gmra.mxu0 %v1490
    %v1673 = vpop.f32.mrf.mxu0
    %v1674 = vadd.f32 %v1518, %v1673
    %v1675 = vpop.f32.mrf.mxu0
    %v1676 = vpop.f32.mrf.mxu0
    %v1677 = vadd.f32 %v1518, %v1676
    %v1678 = vpop.f32.mrf.mxu0
    %1679 = vmatprep.mubr.bf16.mxu0 0
    %1680 = vmatmul.mubr.bf16.gmra.mxu0 %v1491
    %v1681 = vpop.f32.mrf.mxu0
    %v1682 = vadd.f32 %v1518, %v1681
    %v1683 = vpop.f32.mrf.mxu0
    %v1684 = vpop.f32.mrf.mxu0
    %v1685 = vadd.f32 %v1518, %v1684
    %v1686 = vpop.f32.mrf.mxu0
    %1687 = vmatprep.mubr.bf16.mxu0 0
    %1688 = vmatmul.mubr.bf16.gmra.mxu0 %v1492
    %v1689 = vpop.f32.mrf.mxu0
    %v1690 = vadd.f32 %v1518, %v1689
    %v1691 = vpop.f32.mrf.mxu0
    %v1692 = vpop.f32.mrf.mxu0
    %v1693 = vadd.f32 %v1518, %v1692
    %v1694 = vpop.f32.mrf.mxu0
    %1695 = vmatprep.mubr.bf16.mxu0 0
    %1696 = vmatmul.mubr.bf16.gmra.mxu0 %v1493
    %v1697 = vpop.f32.mrf.mxu0
    %v1698 = vadd.f32 %v1518, %v1697
    %v1699 = vpop.f32.mrf.mxu0
    %v1700 = vpop.f32.mrf.mxu0
    %v1701 = vadd.f32 %v1518, %v1700
    %v1702 = vpop.f32.mrf.mxu0
    %1703 = vmatprep.mubr.bf16.mxu0 0
    %1704 = vmatmul.mubr.bf16.gmra.mxu0 %v1494
    %v1705 = vpop.f32.mrf.mxu0
    %v1706 = vadd.f32 %v1518, %v1705
    %v1707 = vpop.f32.mrf.mxu0
    %v1708 = vpop.f32.mrf.mxu0
    %v1709 = vadd.f32 %v1518, %v1708
    %v1710 = vpop.f32.mrf.mxu0
    %1711 = vmatprep.mubr.bf16.mxu0 0
    %1712 = vmatmul.mubr.bf16.gmra.mxu0 %v1495
    %v1713 = vpop.f32.mrf.mxu0
    %v1714 = vadd.f32 %v1518, %v1713
    %v1715 = vpop.f32.mrf.mxu0
    %v1716 = vpop.f32.mrf.mxu0
    %v1717 = vadd.f32 %v1518, %v1716
    %v1718 = vpop.f32.mrf.mxu0
    %1719 = vmatprep.mubr.bf16.mxu0 0
    %1720 = vmatmul.mubr.bf16.gmra.mxu0 %v1496
    %v1721 = vpop.f32.mrf.mxu0
    %v1722 = vadd.f32 %v1518, %v1721
    %v1723 = vpop.f32.mrf.mxu0
    %v1724 = vpop.f32.mrf.mxu0
    %v1725 = vadd.f32 %v1518, %v1724
    %v1726 = vpop.f32.mrf.mxu0
    %1727 = vdwg.mxu0
    %v1728 = vmul.f32 %v1602, 0.01
    %v1729 = vmul.f32 %v1605, 0.01
    %v1730 = vmul.f32 %v1610, 0.01
    %v1731 = vmul.f32 %v1613, 0.01
    %v1732 = vmul.f32 %v1618, 0.01
    %v1733 = vmul.f32 %v1621, 0.01
    %v1734 = vmul.f32 %v1626, 0.01
    %v1735 = vmul.f32 %v1629, 0.01
    %v1736 = vmul.f32 %v1634, 0.01
    %v1737 = vmul.f32 %v1637, 0.01
    %v1738 = vmul.f32 %v1642, 0.01
    %v1739 = vmul.f32 %v1645, 0.01
    %v1740 = vmul.f32 %v1650, 0.01
    %v1741 = vmul.f32 %v1653, 0.01
    %v1742 = vmul.f32 %v1658, 0.01
    %v1743 = vmul.f32 %v1661, 0.01
    %v1744 = vmul.f32 %v1666, 0.01
    %v1745 = vmul.f32 %v1669, 0.01
    %v1746 = vmul.f32 %v1674, 0.01
    %v1747 = vmul.f32 %v1677, 0.01
    %v1748 = vmul.f32 %v1682, 0.01
    %v1749 = vmul.f32 %v1685, 0.01
    %v1750 = vmul.f32 %v1690, 0.01
    %v1751 = vmul.f32 %v1693, 0.01
    %v1752 = vmul.f32 %v1698, 0.01
    %v1753 = vmul.f32 %v1701, 0.01
    %v1754 = vmul.f32 %v1706, 0.01
    %v1755 = vmul.f32 %v1709, 0.01
    %v1756 = vmul.f32 %v1714, 0.01
    %v1757 = vmul.f32 %v1717, 0.01
    %v1758 = vmul.f32 %v1722, 0.01
    %v1759 = vmul.f32 %v1725, 0.01
    %v1760 = vmax.f32 %v1602, %v1728
    %v1761 = vmax.f32 %v1605, %v1729
    %v1762 = vmax.f32 %v1610, %v1730
    %v1763 = vmax.f32 %v1613, %v1731
    %v1764 = vmax.f32 %v1618, %v1732
    %v1765 = vmax.f32 %v1621, %v1733
    %v1766 = vmax.f32 %v1626, %v1734
    %v1767 = vmax.f32 %v1629, %v1735
    %v1768 = vmax.f32 %v1634, %v1736
    %v1769 = vmax.f32 %v1637, %v1737
    %v1770 = vmax.f32 %v1642, %v1738
    %v1771 = vmax.f32 %v1645, %v1739
    %v1772 = vmax.f32 %v1650, %v1740
    %v1773 = vmax.f32 %v1653, %v1741
    %v1774 = vmax.f32 %v1658, %v1742
    %v1775 = vmax.f32 %v1661, %v1743
    %v1776 = vmax.f32 %v1666, %v1744
    %v1777 = vmax.f32 %v1669, %v1745
    %v1778 = vmax.f32 %v1674, %v1746
    %v1779 = vmax.f32 %v1677, %v1747
    %v1780 = vmax.f32 %v1682, %v1748
    %v1781 = vmax.f32 %v1685, %v1749
    %v1782 = vmax.f32 %v1690, %v1750
    %v1783 = vmax.f32 %v1693, %v1751
    %v1784 = vmax.f32 %v1698, %v1752
    %v1785 = vmax.f32 %v1701, %v1753
    %v1786 = vmax.f32 %v1706, %v1754
    %v1787 = vmax.f32 %v1709, %v1755
    %v1788 = vmax.f32 %v1714, %v1756
    %v1789 = vmax.f32 %v1717, %v1757
    %v1790 = vmax.f32 %v1722, %v1758
    %v1791 = vmax.f32 %v1725, %v1759
    %v1792 = vadd.f32 %v1760, %v1761
    %v1793 = vadd.f32 %v1792, %v1762
    %v1794 = vadd.f32 %v1793, %v1763
    %v1795 = vadd.f32 %v1794, %v1764
    %v1796 = vadd.f32 %v1795, %v1765
    %v1797 = vadd.f32 %v1796, %v1766
    %v1798 = vadd.f32 %v1797, %v1767
    %v1799 = vadd.f32 %v1798, %v1768
    %v1800 = vadd.f32 %v1799, %v1769
    %v1801 = vadd.f32 %v1800, %v1770
    %v1802 = vadd.f32 %v1801, %v1771
    %v1803 = vadd.f32 %v1802, %v1772
    %v1804 = vadd.f32 %v1803, %v1773
    %v1805 = vadd.f32 %v1804, %v1774
    %v1806 = vadd.f32 %v1805, %v1775
    %v1807 = vadd.f32 %v1806, %v1776
    %v1808 = vadd.f32 %v1807, %v1777
    %v1809 = vadd.f32 %v1808, %v1778
    %v1810 = vadd.f32 %v1809, %v1779
    %v1811 = vadd.f32 %v1810, %v1780
    %v1812 = vadd.f32 %v1811, %v1781
    %v1813 = vadd.f32 %v1812, %v1782
    %v1814 = vadd.f32 %v1813, %v1783
    %v1815 = vadd.f32 %v1814, %v1784
    %v1816 = vadd.f32 %v1815, %v1785
    %v1817 = vadd.f32 %v1816, %v1786
    %v1818 = vadd.f32 %v1817, %v1787
    %v1819 = vadd.f32 %v1818, %v1788
    %v1820 = vadd.f32 %v1819, %v1789
    %v1821 = vadd.f32 %v1820, %v1790
    %v1822 = vadd.f32 %v1821, %v1791
    %v1823 = vrot.slane %v1822, 4
    %v1824 = vadd.f32 %v1822, %v1823
    %v1825 = vrot.slane %v1824, 2
    %v1826 = vadd.f32 %v1824, %v1825
    %v1827 = vrot.slane %v1826, 1
    %v1828 = vadd.f32 %v1826, %v1827
    %v1829 = vmul.f32 %v1760, %v1760
    %v1830 = vmul.f32 %v1761, %v1761
    %v1831 = vmul.f32 %v1762, %v1762
    %v1832 = vmul.f32 %v1763, %v1763
    %v1833 = vmul.f32 %v1764, %v1764
    %v1834 = vmul.f32 %v1765, %v1765
    %v1835 = vmul.f32 %v1766, %v1766
    %v1836 = vmul.f32 %v1767, %v1767
    %v1837 = vmul.f32 %v1768, %v1768
    %v1838 = vmul.f32 %v1769, %v1769
    %v1839 = vmul.f32 %v1770, %v1770
    %v1840 = vmul.f32 %v1771, %v1771
    %v1841 = vmul.f32 %v1772, %v1772
    %v1842 = vmul.f32 %v1773, %v1773
    %v1843 = vmul.f32 %v1774, %v1774
    %v1844 = vmul.f32 %v1775, %v1775
    %v1845 = vmul.f32 %v1776, %v1776
    %v1846 = vmul.f32 %v1777, %v1777
    %v1847 = vmul.f32 %v1778, %v1778
    %v1848 = vmul.f32 %v1779, %v1779
    %v1849 = vmul.f32 %v1780, %v1780
    %v1850 = vmul.f32 %v1781, %v1781
    %v1851 = vmul.f32 %v1782, %v1782
    %v1852 = vmul.f32 %v1783, %v1783
    %v1853 = vmul.f32 %v1784, %v1784
    %v1854 = vmul.f32 %v1785, %v1785
    %v1855 = vmul.f32 %v1786, %v1786
    %v1856 = vmul.f32 %v1787, %v1787
    %v1857 = vmul.f32 %v1788, %v1788
    %v1858 = vmul.f32 %v1789, %v1789
    %v1859 = vmul.f32 %v1790, %v1790
    %v1860 = vmul.f32 %v1791, %v1791
    %v1861 = vadd.f32 %v1829, %v1830
    %v1862 = vadd.f32 %v1861, %v1831
    %v1863 = vadd.f32 %v1862, %v1832
    %v1864 = vadd.f32 %v1863, %v1833
    %v1865 = vadd.f32 %v1864, %v1834
    %v1866 = vadd.f32 %v1865, %v1835
    %v1867 = vadd.f32 %v1866, %v1836
    %v1868 = vadd.f32 %v1867, %v1837
    %v1869 = vadd.f32 %v1868, %v1838
    %v1870 = vadd.f32 %v1869, %v1839
    %v1871 = vadd.f32 %v1870, %v1840
    %v1872 = vadd.f32 %v1871, %v1841
    %v1873 = vadd.f32 %v1872, %v1842
    %v1874 = vadd.f32 %v1873, %v1843
    %v1875 = vadd.f32 %v1874, %v1844
    %v1876 = vadd.f32 %v1875, %v1845
    %v1877 = vadd.f32 %v1876, %v1846
    %v1878 = vadd.f32 %v1877, %v1847
    %v1879 = vadd.f32 %v1878, %v1848
    %v1880 = vadd.f32 %v1879, %v1849
    %v1881 = vadd.f32 %v1880, %v1850
    %v1882 = vadd.f32 %v1881, %v1851
    %v1883 = vadd.f32 %v1882, %v1852
    %v1884 = vadd.f32 %v1883, %v1853
    %v1885 = vadd.f32 %v1884, %v1854
    %v1886 = vadd.f32 %v1885, %v1855
    %v1887 = vadd.f32 %v1886, %v1856
    %v1888 = vadd.f32 %v1887, %v1857
    %v1889 = vadd.f32 %v1888, %v1858
    %v1890 = vadd.f32 %v1889, %v1859
    %v1891 = vadd.f32 %v1890, %v1860
    %v1892 = vrot.slane %v1891, 4
    %v1893 = vadd.f32 %v1891, %v1892
    %v1894 = vrot.slane %v1893, 2
    %v1895 = vadd.f32 %v1893, %v1894
    %v1896 = vrot.slane %v1895, 1
    %v1897 = vadd.f32 %v1895, %v1896
    %v1898 = vmul.f32 %v1828, 0.00390625
    %v1899 = vmul.f32 %v1897, 0.00390625
    %v1900 = vmul.f32 %v1898, %v1898
    %v1901 = vsub.f32 %v1899, %v1900
    %v1902 = vmax.f32 %v1901, 0.0
    %v1903 = vadd.f32 %v1902, 1e-05
    %v1904 = vrsqrt.pop %v1903
    %v1905 = vld [vmem:[#allocation7 + $0x7] sm:$0x1]
    %v1906 = vmul.f32 %v1904, %v1905
    %v1907 = vld [vmem:[#allocation7 + $0xb] sm:$0x1]
    %v1908 = vmul.f32 %v1898, %v1906
    %v1909 = vsub.f32 %v1907, %v1908
    %v1910 = vlaneseq
    %v1911 = vshrl.u32 %v1910, 7
    %v1912 = vsub.s32 0, %v1911
    %v1913 = vrot.slane %v1906, %v1912
    %v1914 = vmul.f32 %v1760, %v1913
    %v1915 = vmul.f32 %v1761, %v1913
    %v1916 = vmul.f32 %v1762, %v1913
    %v1917 = vmul.f32 %v1763, %v1913
    %v1918 = vmul.f32 %v1764, %v1913
    %v1919 = vmul.f32 %v1765, %v1913
    %v1920 = vmul.f32 %v1766, %v1913
    %v1921 = vmul.f32 %v1767, %v1913
    %v1922 = vmul.f32 %v1768, %v1913
    %v1923 = vmul.f32 %v1769, %v1913
    %v1924 = vmul.f32 %v1770, %v1913
    %v1925 = vmul.f32 %v1771, %v1913
    %v1926 = vmul.f32 %v1772, %v1913
    %v1927 = vmul.f32 %v1773, %v1913
    %v1928 = vmul.f32 %v1774, %v1913
    %v1929 = vmul.f32 %v1775, %v1913
    %v1930 = vmul.f32 %v1776, %v1913
    %v1931 = vmul.f32 %v1777, %v1913
    %v1932 = vmul.f32 %v1778, %v1913
    %v1933 = vmul.f32 %v1779, %v1913
    %v1934 = vmul.f32 %v1780, %v1913
    %v1935 = vmul.f32 %v1781, %v1913
    %v1936 = vmul.f32 %v1782, %v1913
    %v1937 = vmul.f32 %v1783, %v1913
    %v1938 = vmul.f32 %v1784, %v1913
    %v1939 = vmul.f32 %v1785, %v1913
    %v1940 = vmul.f32 %v1786, %v1913
    %v1941 = vmul.f32 %v1787, %v1913
    %v1942 = vmul.f32 %v1788, %v1913
    %v1943 = vmul.f32 %v1789, %v1913
    %v1944 = vmul.f32 %v1790, %v1913
    %v1945 = vmul.f32 %v1791, %v1913
    %v1946 = vlaneseq
    %v1947 = vshrl.u32 %v1946, 7
    %v1948 = vsub.s32 0, %v1947
    %v1949 = vrot.slane %v1909, %v1948
    %v1950 = vadd.f32 %v1914, %v1949
    %v1951 = vadd.f32 %v1915, %v1949
    %v1952 = vadd.f32 %v1916, %v1949
    %v1953 = vadd.f32 %v1917, %v1949
    %v1954 = vadd.f32 %v1918, %v1949
    %v1955 = vadd.f32 %v1919, %v1949
    %v1956 = vadd.f32 %v1920, %v1949
    %v1957 = vadd.f32 %v1921, %v1949
    %v1958 = vadd.f32 %v1922, %v1949
    %v1959 = vadd.f32 %v1923, %v1949
    %v1960 = vadd.f32 %v1924, %v1949
    %v1961 = vadd.f32 %v1925, %v1949
    %v1962 = vadd.f32 %v1926, %v1949
    %v1963 = vadd.f32 %v1927, %v1949
    %v1964 = vadd.f32 %v1928, %v1949
    %v1965 = vadd.f32 %v1929, %v1949
    %v1966 = vadd.f32 %v1930, %v1949
    %v1967 = vadd.f32 %v1931, %v1949
    %v1968 = vadd.f32 %v1932, %v1949
    %v1969 = vadd.f32 %v1933, %v1949
    %v1970 = vadd.f32 %v1934, %v1949
    %v1971 = vadd.f32 %v1935, %v1949
    %v1972 = vadd.f32 %v1936, %v1949
    %v1973 = vadd.f32 %v1937, %v1949
    %v1974 = vadd.f32 %v1938, %v1949
    %v1975 = vadd.f32 %v1939, %v1949
    %v1976 = vadd.f32 %v1940, %v1949
    %v1977 = vadd.f32 %v1941, %v1949
    %v1978 = vadd.f32 %v1942, %v1949
    %v1979 = vadd.f32 %v1943, %v1949
    %v1980 = vadd.f32 %v1944, %v1949
    %v1981 = vadd.f32 %v1945, %v1949
    %v1982 = vpack.c.bf16 %v1951, %v1950
    %v1983 = vpack.c.bf16 %v1953, %v1952
    %v1984 = vpack.c.bf16 %v1955, %v1954
    %v1985 = vpack.c.bf16 %v1957, %v1956
    %v1986 = vpack.c.bf16 %v1959, %v1958
    %v1987 = vpack.c.bf16 %v1961, %v1960
    %v1988 = vpack.c.bf16 %v1963, %v1962
    %v1989 = vpack.c.bf16 %v1965, %v1964
    %v1990 = vpack.c.bf16 %v1967, %v1966
    %v1991 = vpack.c.bf16 %v1969, %v1968
    %v1992 = vpack.c.bf16 %v1971, %v1970
    %v1993 = vpack.c.bf16 %v1973, %v1972
    %v1994 = vpack.c.bf16 %v1975, %v1974
    %v1995 = vpack.c.bf16 %v1977, %v1976
    %v1996 = vpack.c.bf16 %v1979, %v1978
    %v1997 = vpack.c.bf16 %v1981, %v1980
    %s1998 = scalar_lea.vmem [#allocation5], 256
    %v1999 = vld [vmem:[%s1998] sm:$0xf]
    %v2000 = vld [vmem:[%s1998 + $0x4] sm:$0xf]
    %v2001 = vld [vmem:[%s1998 + $0x8] sm:$0xf]
    %v2002 = vld [vmem:[%s1998 + $0xc] sm:$0xf]
    %v2003 = vld [vmem:[%s1998 + $0x10] sm:$0xf]
    %v2004 = vld [vmem:[%s1998 + $0x14] sm:$0xf]
    %v2005 = vld [vmem:[%s1998 + $0x18] sm:$0xf]
    %v2006 = vld [vmem:[%s1998 + $0x1c] sm:$0xf]
    %v2007 = vld [vmem:[%s1998 + $0x20] sm:$0xf]
    %v2008 = vld [vmem:[%s1998 + $0x24] sm:$0xf]
    %v2009 = vld [vmem:[%s1998 + $0x28] sm:$0xf]
    %v2010 = vld [vmem:[%s1998 + $0x2c] sm:$0xf]
    %v2011 = vld [vmem:[%s1998 + $0x30] sm:$0xf]
    %v2012 = vld [vmem:[%s1998 + $0x34] sm:$0xf]
    %v2013 = vld [vmem:[%s1998 + $0x38] sm:$0xf]
    %v2014 = vld [vmem:[%s1998 + $0x3c] sm:$0xf]
    %v2015 = vld [vmem:[#allocation7 + $0x4] sm:$0x1]
    %v2016 = vlaneseq
    %v2017 = vshrl.u32 %v2016, 7
    %v2018 = vsub.s32 0, %v2017
    %v2019 = vrot.slane %v2015, %v2018
    %v2036 = vunpack.c.l.b16 %v1999
    %v2037 = vunpack.c.l.b16 %v2000
    %v2038 = vunpack.c.l.b16 %v2001
    %v2039 = vunpack.c.l.b16 %v2002
    %v2040 = vunpack.c.l.b16 %v2003
    %v2041 = vunpack.c.l.b16 %v2004
    %v2042 = vunpack.c.l.b16 %v2005
    %v2043 = vunpack.c.l.b16 %v2006
    %v2044 = vunpack.c.l.b16 %v2007
    %v2045 = vunpack.c.l.b16 %v2008
    %v2046 = vunpack.c.l.b16 %v2009
    %v2047 = vunpack.c.l.b16 %v2010
    %v2048 = vunpack.c.l.b16 %v2011
    %v2049 = vunpack.c.l.b16 %v2012
    %v2050 = vunpack.c.l.b16 %v2013
    %v2051 = vunpack.c.l.b16 %v2014
    %v2052 = vpack.c.b16 %v2037, %v2036
    %v2053 = vpack.c.b16 %v2039, %v2038
    %v2054 = vpack.c.b16 %v2041, %v2040
    %v2055 = vpack.c.b16 %v2043, %v2042
    %v2056 = vpack.c.b16 %v2045, %v2044
    %v2057 = vpack.c.b16 %v2047, %v2046
    %v2058 = vpack.c.b16 %v2049, %v2048
    %v2059 = vpack.c.b16 %v2051, %v2050
    %2068 = vmatprep.subr.bf16.mxu0 0
    %2069 = vmatpush1.bf16.msra.mxu0 %v2059
    %2070 = vmatprep.subr.bf16.mxu0 0
    %2071 = vmatpush1.bf16.msra.mxu0 %v2058
    %2072 = vmatprep.subr.bf16.mxu0 0
    %2073 = vmatpush1.bf16.msra.mxu0 %v2057
    %2074 = vmatprep.subr.bf16.mxu0 0
    %2075 = vmatpush1.bf16.msra.mxu0 %v2056
    %2076 = vmatprep.subr.bf16.mxu0 0
    %2077 = vmatpush1.bf16.msra.mxu0 %v2055
    %2078 = vmatprep.subr.bf16.mxu0 0
    %2079 = vmatpush1.bf16.msra.mxu0 %v2054
    %2080 = vmatprep.subr.bf16.mxu0 0
    %2081 = vmatpush1.bf16.msra.mxu0 %v2053
    %2082 = vmatprep.subr.bf16.mxu0 0
    %2083 = vmatpush1.bf16.msra.mxu0 %v2052
    %2084 = vmatprep.subr.bf16.mxu0 0
    %2085 = vmatpush2.bf16.msra.mxu0 0
    %2086 = vmatprep.subr.bf16.mxu0 0
    %2087 = vmatpush2.bf16.msra.mxu0 0
    %2088 = vmatprep.subr.bf16.mxu0 0
    %2089 = vmatpush2.bf16.msra.mxu0 0
    %2090 = vmatprep.subr.bf16.mxu0 0
    %2091 = vmatpush2.bf16.msra.mxu0 0
    %2092 = vmatprep.subr.bf16.mxu0 0
    %2093 = vmatpush2.bf16.msra.mxu0 0
    %2094 = vmatprep.subr.bf16.mxu0 0
    %2095 = vmatpush2.bf16.msra.mxu0 0
    %2096 = vmatprep.subr.bf16.mxu0 0
    %2097 = vmatpush2.bf16.msra.mxu0 0
    %2098 = vmatprep.subr.bf16.mxu0 0
    %2099 = vmatpush2.bf16.msra.mxu0 0
    %2100 = vmatprep.mubr.bf16.mxu0 0
    %2101 = vmatmul.mubr.bf16.gmra.mxu0 %v1982
    %v2102 = vpop.f32.mrf.mxu0
    %v2103 = vadd.f32 %v2019, %v2102
    %v2104 = vpop.f32.mrf.mxu0
    %v2105 = vpop.f32.mrf.mxu0
    %v2106 = vadd.f32 %v2019, %v2105
    %v2107 = vpop.f32.mrf.mxu0
    %2108 = vmatprep.mubr.bf16.mxu0 0
    %2109 = vmatmul.mubr.bf16.gmra.mxu0 %v1983
    %v2110 = vpop.f32.mrf.mxu0
    %v2111 = vadd.f32 %v2019, %v2110
    %v2112 = vpop.f32.mrf.mxu0
    %v2113 = vpop.f32.mrf.mxu0
    %v2114 = vadd.f32 %v2019, %v2113
    %v2115 = vpop.f32.mrf.mxu0
    %2116 = vmatprep.mubr.bf16.mxu0 0
    %2117 = vmatmul.mubr.bf16.gmra.mxu0 %v1984
    %v2118 = vpop.f32.mrf.mxu0
    %v2119 = vadd.f32 %v2019, %v2118
    %v2120 = vpop.f32.mrf.mxu0
    %v2121 = vpop.f32.mrf.mxu0
    %v2122 = vadd.f32 %v2019, %v2121
    %v2123 = vpop.f32.mrf.mxu0
    %2124 = vmatprep.mubr.bf16.mxu0 0
    %2125 = vmatmul.mubr.bf16.gmra.mxu0 %v1985
    %v2126 = vpop.f32.mrf.mxu0
    %v2127 = vadd.f32 %v2019, %v2126
    %v2128 = vpop.f32.mrf.mxu0
    %v2129 = vpop.f32.mrf.mxu0
    %v2130 = vadd.f32 %v2019, %v2129
    %v2131 = vpop.f32.mrf.mxu0
    %2132 = vmatprep.mubr.bf16.mxu0 0
    %2133 = vmatmul.mubr.bf16.gmra.mxu0 %v1986
    %v2134 = vpop.f32.mrf.mxu0
    %v2135 = vadd.f32 %v2019, %v2134
    %v2136 = vpop.f32.mrf.mxu0
    %v2137 = vpop.f32.mrf.mxu0
    %v2138 = vadd.f32 %v2019, %v2137
    %v2139 = vpop.f32.mrf.mxu0
    %2140 = vmatprep.mubr.bf16.mxu0 0
    %2141 = vmatmul.mubr.bf16.gmra.mxu0 %v1987
    %v2142 = vpop.f32.mrf.mxu0
    %v2143 = vadd.f32 %v2019, %v2142
    %v2144 = vpop.f32.mrf.mxu0
    %v2145 = vpop.f32.mrf.mxu0
    %v2146 = vadd.f32 %v2019, %v2145
    %v2147 = vpop.f32.mrf.mxu0
    %2148 = vmatprep.mubr.bf16.mxu0 0
    %2149 = vmatmul.mubr.bf16.gmra.mxu0 %v1988
    %v2150 = vpop.f32.mrf.mxu0
    %v2151 = vadd.f32 %v2019, %v2150
    %v2152 = vpop.f32.mrf.mxu0
    %v2153 = vpop.f32.mrf.mxu0
    %v2154 = vadd.f32 %v2019, %v2153
    %v2155 = vpop.f32.mrf.mxu0
    %2156 = vmatprep.mubr.bf16.mxu0 0
    %2157 = vmatmul.mubr.bf16.gmra.mxu0 %v1989
    %v2158 = vpop.f32.mrf.mxu0
    %v2159 = vadd.f32 %v2019, %v2158
    %v2160 = vpop.f32.mrf.mxu0
    %v2161 = vpop.f32.mrf.mxu0
    %v2162 = vadd.f32 %v2019, %v2161
    %v2163 = vpop.f32.mrf.mxu0
    %2164 = vmatprep.mubr.bf16.mxu0 0
    %2165 = vmatmul.mubr.bf16.gmra.mxu0 %v1990
    %v2166 = vpop.f32.mrf.mxu0
    %v2167 = vadd.f32 %v2019, %v2166
    %v2168 = vpop.f32.mrf.mxu0
    %v2169 = vpop.f32.mrf.mxu0
    %v2170 = vadd.f32 %v2019, %v2169
    %v2171 = vpop.f32.mrf.mxu0
    %2172 = vmatprep.mubr.bf16.mxu0 0
    %2173 = vmatmul.mubr.bf16.gmra.mxu0 %v1991
    %v2174 = vpop.f32.mrf.mxu0
    %v2175 = vadd.f32 %v2019, %v2174
    %v2176 = vpop.f32.mrf.mxu0
    %v2177 = vpop.f32.mrf.mxu0
    %v2178 = vadd.f32 %v2019, %v2177
    %v2179 = vpop.f32.mrf.mxu0
    %2180 = vmatprep.mubr.bf16.mxu0 0
    %2181 = vmatmul.mubr.bf16.gmra.mxu0 %v1992
    %v2182 = vpop.f32.mrf.mxu0
    %v2183 = vadd.f32 %v2019, %v2182
    %v2184 = vpop.f32.mrf.mxu0
    %v2185 = vpop.f32.mrf.mxu0
    %v2186 = vadd.f32 %v2019, %v2185
    %v2187 = vpop.f32.mrf.mxu0
    %2188 = vmatprep.mubr.bf16.mxu0 0
    %2189 = vmatmul.mubr.bf16.gmra.mxu0 %v1993
    %v2190 = vpop.f32.mrf.mxu0
    %v2191 = vadd.f32 %v2019, %v2190
    %v2192 = vpop.f32.mrf.mxu0
    %v2193 = vpop.f32.mrf.mxu0
    %v2194 = vadd.f32 %v2019, %v2193
    %v2195 = vpop.f32.mrf.mxu0
    %2196 = vmatprep.mubr.bf16.mxu0 0
    %2197 = vmatmul.mubr.bf16.gmra.mxu0 %v1994
    %v2198 = vpop.f32.mrf.mxu0
    %v2199 = vadd.f32 %v2019, %v2198
    %v2200 = vpop.f32.mrf.mxu0
    %v2201 = vpop.f32.mrf.mxu0
    %v2202 = vadd.f32 %v2019, %v2201
    %v2203 = vpop.f32.mrf.mxu0
    %2204 = vmatprep.mubr.bf16.mxu0 0
    %2205 = vmatmul.mubr.bf16.gmra.mxu0 %v1995
    %v2206 = vpop.f32.mrf.mxu0
    %v2207 = vadd.f32 %v2019, %v2206
    %v2208 = vpop.f32.mrf.mxu0
    %v2209 = vpop.f32.mrf.mxu0
    %v2210 = vadd.f32 %v2019, %v2209
    %v2211 = vpop.f32.mrf.mxu0
    %2212 = vmatprep.mubr.bf16.mxu0 0
    %2213 = vmatmul.mubr.bf16.gmra.mxu0 %v1996
    %v2214 = vpop.f32.mrf.mxu0
    %v2215 = vadd.f32 %v2019, %v2214
    %v2216 = vpop.f32.mrf.mxu0
    %v2217 = vpop.f32.mrf.mxu0
    %v2218 = vadd.f32 %v2019, %v2217
    %v2219 = vpop.f32.mrf.mxu0
    %2220 = vmatprep.mubr.bf16.mxu0 0
    %2221 = vmatmul.mubr.bf16.gmra.mxu0 %v1997
    %v2222 = vpop.f32.mrf.mxu0
    %v2223 = vadd.f32 %v2019, %v2222
    %v2224 = vpop.f32.mrf.mxu0
    %v2225 = vpop.f32.mrf.mxu0
    %v2226 = vadd.f32 %v2019, %v2225
    %v2227 = vpop.f32.mrf.mxu0
    %2228 = vdwg.mxu0
    %v2229 = vmul.f32 %v2103, 0.01
    %v2230 = vmul.f32 %v2106, 0.01
    %v2231 = vmul.f32 %v2111, 0.01
    %v2232 = vmul.f32 %v2114, 0.01
    %v2233 = vmul.f32 %v2119, 0.01
    %v2234 = vmul.f32 %v2122, 0.01
    %v2235 = vmul.f32 %v2127, 0.01
    %v2236 = vmul.f32 %v2130, 0.01
    %v2237 = vmul.f32 %v2135, 0.01
    %v2238 = vmul.f32 %v2138, 0.01
    %v2239 = vmul.f32 %v2143, 0.01
    %v2240 = vmul.f32 %v2146, 0.01
    %v2241 = vmul.f32 %v2151, 0.01
    %v2242 = vmul.f32 %v2154, 0.01
    %v2243 = vmul.f32 %v2159, 0.01
    %v2244 = vmul.f32 %v2162, 0.01
    %v2245 = vmul.f32 %v2167, 0.01
    %v2246 = vmul.f32 %v2170, 0.01
    %v2247 = vmul.f32 %v2175, 0.01
    %v2248 = vmul.f32 %v2178, 0.01
    %v2249 = vmul.f32 %v2183, 0.01
    %v2250 = vmul.f32 %v2186, 0.01
    %v2251 = vmul.f32 %v2191, 0.01
    %v2252 = vmul.f32 %v2194, 0.01
    %v2253 = vmul.f32 %v2199, 0.01
    %v2254 = vmul.f32 %v2202, 0.01
    %v2255 = vmul.f32 %v2207, 0.01
    %v2256 = vmul.f32 %v2210, 0.01
    %v2257 = vmul.f32 %v2215, 0.01
    %v2258 = vmul.f32 %v2218, 0.01
    %v2259 = vmul.f32 %v2223, 0.01
    %v2260 = vmul.f32 %v2226, 0.01
    %v2261 = vmax.f32 %v2103, %v2229
    %v2262 = vmax.f32 %v2106, %v2230
    %v2263 = vmax.f32 %v2111, %v2231
    %v2264 = vmax.f32 %v2114, %v2232
    %v2265 = vmax.f32 %v2119, %v2233
    %v2266 = vmax.f32 %v2122, %v2234
    %v2267 = vmax.f32 %v2127, %v2235
    %v2268 = vmax.f32 %v2130, %v2236
    %v2269 = vmax.f32 %v2135, %v2237
    %v2270 = vmax.f32 %v2138, %v2238
    %v2271 = vmax.f32 %v2143, %v2239
    %v2272 = vmax.f32 %v2146, %v2240
    %v2273 = vmax.f32 %v2151, %v2241
    %v2274 = vmax.f32 %v2154, %v2242
    %v2275 = vmax.f32 %v2159, %v2243
    %v2276 = vmax.f32 %v2162, %v2244
    %v2277 = vmax.f32 %v2167, %v2245
    %v2278 = vmax.f32 %v2170, %v2246
    %v2279 = vmax.f32 %v2175, %v2247
    %v2280 = vmax.f32 %v2178, %v2248
    %v2281 = vmax.f32 %v2183, %v2249
    %v2282 = vmax.f32 %v2186, %v2250
    %v2283 = vmax.f32 %v2191, %v2251
    %v2284 = vmax.f32 %v2194, %v2252
    %v2285 = vmax.f32 %v2199, %v2253
    %v2286 = vmax.f32 %v2202, %v2254
    %v2287 = vmax.f32 %v2207, %v2255
    %v2288 = vmax.f32 %v2210, %v2256
    %v2289 = vmax.f32 %v2215, %v2257
    %v2290 = vmax.f32 %v2218, %v2258
    %v2291 = vmax.f32 %v2223, %v2259
    %v2292 = vmax.f32 %v2226, %v2260
    %v2293 = vadd.f32 %v2261, %v2262
    %v2294 = vadd.f32 %v2293, %v2263
    %v2295 = vadd.f32 %v2294, %v2264
    %v2296 = vadd.f32 %v2295, %v2265
    %v2297 = vadd.f32 %v2296, %v2266
    %v2298 = vadd.f32 %v2297, %v2267
    %v2299 = vadd.f32 %v2298, %v2268
    %v2300 = vadd.f32 %v2299, %v2269
    %v2301 = vadd.f32 %v2300, %v2270
    %v2302 = vadd.f32 %v2301, %v2271
    %v2303 = vadd.f32 %v2302, %v2272
    %v2304 = vadd.f32 %v2303, %v2273
    %v2305 = vadd.f32 %v2304, %v2274
    %v2306 = vadd.f32 %v2305, %v2275
    %v2307 = vadd.f32 %v2306, %v2276
    %v2308 = vadd.f32 %v2307, %v2277
    %v2309 = vadd.f32 %v2308, %v2278
    %v2310 = vadd.f32 %v2309, %v2279
    %v2311 = vadd.f32 %v2310, %v2280
    %v2312 = vadd.f32 %v2311, %v2281
    %v2313 = vadd.f32 %v2312, %v2282
    %v2314 = vadd.f32 %v2313, %v2283
    %v2315 = vadd.f32 %v2314, %v2284
    %v2316 = vadd.f32 %v2315, %v2285
    %v2317 = vadd.f32 %v2316, %v2286
    %v2318 = vadd.f32 %v2317, %v2287
    %v2319 = vadd.f32 %v2318, %v2288
    %v2320 = vadd.f32 %v2319, %v2289
    %v2321 = vadd.f32 %v2320, %v2290
    %v2322 = vadd.f32 %v2321, %v2291
    %v2323 = vadd.f32 %v2322, %v2292
    %v2324 = vrot.slane %v2323, 4
    %v2325 = vadd.f32 %v2323, %v2324
    %v2326 = vrot.slane %v2325, 2
    %v2327 = vadd.f32 %v2325, %v2326
    %v2328 = vrot.slane %v2327, 1
    %v2329 = vadd.f32 %v2327, %v2328
    %v2330 = vmul.f32 %v2261, %v2261
    %v2331 = vmul.f32 %v2262, %v2262
    %v2332 = vmul.f32 %v2263, %v2263
    %v2333 = vmul.f32 %v2264, %v2264
    %v2334 = vmul.f32 %v2265, %v2265
    %v2335 = vmul.f32 %v2266, %v2266
    %v2336 = vmul.f32 %v2267, %v2267
    %v2337 = vmul.f32 %v2268, %v2268
    %v2338 = vmul.f32 %v2269, %v2269
    %v2339 = vmul.f32 %v2270, %v2270
    %v2340 = vmul.f32 %v2271, %v2271
    %v2341 = vmul.f32 %v2272, %v2272
    %v2342 = vmul.f32 %v2273, %v2273
    %v2343 = vmul.f32 %v2274, %v2274
    %v2344 = vmul.f32 %v2275, %v2275
    %v2345 = vmul.f32 %v2276, %v2276
    %v2346 = vmul.f32 %v2277, %v2277
    %v2347 = vmul.f32 %v2278, %v2278
    %v2348 = vmul.f32 %v2279, %v2279
    %v2349 = vmul.f32 %v2280, %v2280
    %v2350 = vmul.f32 %v2281, %v2281
    %v2351 = vmul.f32 %v2282, %v2282
    %v2352 = vmul.f32 %v2283, %v2283
    %v2353 = vmul.f32 %v2284, %v2284
    %v2354 = vmul.f32 %v2285, %v2285
    %v2355 = vmul.f32 %v2286, %v2286
    %v2356 = vmul.f32 %v2287, %v2287
    %v2357 = vmul.f32 %v2288, %v2288
    %v2358 = vmul.f32 %v2289, %v2289
    %v2359 = vmul.f32 %v2290, %v2290
    %v2360 = vmul.f32 %v2291, %v2291
    %v2361 = vmul.f32 %v2292, %v2292
    %v2362 = vadd.f32 %v2330, %v2331
    %v2363 = vadd.f32 %v2362, %v2332
    %v2364 = vadd.f32 %v2363, %v2333
    %v2365 = vadd.f32 %v2364, %v2334
    %v2366 = vadd.f32 %v2365, %v2335
    %v2367 = vadd.f32 %v2366, %v2336
    %v2368 = vadd.f32 %v2367, %v2337
    %v2369 = vadd.f32 %v2368, %v2338
    %v2370 = vadd.f32 %v2369, %v2339
    %v2371 = vadd.f32 %v2370, %v2340
    %v2372 = vadd.f32 %v2371, %v2341
    %v2373 = vadd.f32 %v2372, %v2342
    %v2374 = vadd.f32 %v2373, %v2343
    %v2375 = vadd.f32 %v2374, %v2344
    %v2376 = vadd.f32 %v2375, %v2345
    %v2377 = vadd.f32 %v2376, %v2346
    %v2378 = vadd.f32 %v2377, %v2347
    %v2379 = vadd.f32 %v2378, %v2348
    %v2380 = vadd.f32 %v2379, %v2349
    %v2381 = vadd.f32 %v2380, %v2350
    %v2382 = vadd.f32 %v2381, %v2351
    %v2383 = vadd.f32 %v2382, %v2352
    %v2384 = vadd.f32 %v2383, %v2353
    %v2385 = vadd.f32 %v2384, %v2354
    %v2386 = vadd.f32 %v2385, %v2355
    %v2387 = vadd.f32 %v2386, %v2356
    %v2388 = vadd.f32 %v2387, %v2357
    %v2389 = vadd.f32 %v2388, %v2358
    %v2390 = vadd.f32 %v2389, %v2359
    %v2391 = vadd.f32 %v2390, %v2360
    %v2392 = vadd.f32 %v2391, %v2361
    %v2393 = vrot.slane %v2392, 4
    %v2394 = vadd.f32 %v2392, %v2393
    %v2395 = vrot.slane %v2394, 2
    %v2396 = vadd.f32 %v2394, %v2395
    %v2397 = vrot.slane %v2396, 1
    %v2398 = vadd.f32 %v2396, %v2397
    %v2399 = vmul.f32 %v2329, 0.00390625
    %v2400 = vmul.f32 %v2398, 0.00390625
    %v2401 = vmul.f32 %v2399, %v2399
    %v2402 = vsub.f32 %v2400, %v2401
    %v2403 = vmax.f32 %v2402, 0.0
    %v2404 = vadd.f32 %v2403, 1e-05
    %v2405 = vrsqrt.pop %v2404
    %v2406 = vld [vmem:[#allocation7 + $0x8] sm:$0x1]
    %v2407 = vmul.f32 %v2405, %v2406
    %v2408 = vld [vmem:[#allocation7 + $0xc] sm:$0x1]
    %v2409 = vmul.f32 %v2399, %v2407
    %v2410 = vsub.f32 %v2408, %v2409
    %v2411 = vlaneseq
    %v2412 = vshrl.u32 %v2411, 7
    %v2413 = vsub.s32 0, %v2412
    %v2414 = vrot.slane %v2407, %v2413
    %v2415 = vmul.f32 %v2261, %v2414
    %v2416 = vmul.f32 %v2262, %v2414
    %v2417 = vmul.f32 %v2263, %v2414
    %v2418 = vmul.f32 %v2264, %v2414
    %v2419 = vmul.f32 %v2265, %v2414
    %v2420 = vmul.f32 %v2266, %v2414
    %v2421 = vmul.f32 %v2267, %v2414
    %v2422 = vmul.f32 %v2268, %v2414
    %v2423 = vmul.f32 %v2269, %v2414
    %v2424 = vmul.f32 %v2270, %v2414
    %v2425 = vmul.f32 %v2271, %v2414
    %v2426 = vmul.f32 %v2272, %v2414
    %v2427 = vmul.f32 %v2273, %v2414
    %v2428 = vmul.f32 %v2274, %v2414
    %v2429 = vmul.f32 %v2275, %v2414
    %v2430 = vmul.f32 %v2276, %v2414
    %v2431 = vmul.f32 %v2277, %v2414
    %v2432 = vmul.f32 %v2278, %v2414
    %v2433 = vmul.f32 %v2279, %v2414
    %v2434 = vmul.f32 %v2280, %v2414
    %v2435 = vmul.f32 %v2281, %v2414
    %v2436 = vmul.f32 %v2282, %v2414
    %v2437 = vmul.f32 %v2283, %v2414
    %v2438 = vmul.f32 %v2284, %v2414
    %v2439 = vmul.f32 %v2285, %v2414
    %v2440 = vmul.f32 %v2286, %v2414
    %v2441 = vmul.f32 %v2287, %v2414
    %v2442 = vmul.f32 %v2288, %v2414
    %v2443 = vmul.f32 %v2289, %v2414
    %v2444 = vmul.f32 %v2290, %v2414
    %v2445 = vmul.f32 %v2291, %v2414
    %v2446 = vmul.f32 %v2292, %v2414
    %v2447 = vlaneseq
    %v2448 = vshrl.u32 %v2447, 7
    %v2449 = vsub.s32 0, %v2448
    %v2450 = vrot.slane %v2410, %v2449
    %v2451 = vadd.f32 %v2415, %v2450
    %v2452 = vadd.f32 %v2416, %v2450
    %v2453 = vadd.f32 %v2417, %v2450
    %v2454 = vadd.f32 %v2418, %v2450
    %v2455 = vadd.f32 %v2419, %v2450
    %v2456 = vadd.f32 %v2420, %v2450
    %v2457 = vadd.f32 %v2421, %v2450
    %v2458 = vadd.f32 %v2422, %v2450
    %v2459 = vadd.f32 %v2423, %v2450
    %v2460 = vadd.f32 %v2424, %v2450
    %v2461 = vadd.f32 %v2425, %v2450
    %v2462 = vadd.f32 %v2426, %v2450
    %v2463 = vadd.f32 %v2427, %v2450
    %v2464 = vadd.f32 %v2428, %v2450
    %v2465 = vadd.f32 %v2429, %v2450
    %v2466 = vadd.f32 %v2430, %v2450
    %v2467 = vadd.f32 %v2431, %v2450
    %v2468 = vadd.f32 %v2432, %v2450
    %v2469 = vadd.f32 %v2433, %v2450
    %v2470 = vadd.f32 %v2434, %v2450
    %v2471 = vadd.f32 %v2435, %v2450
    %v2472 = vadd.f32 %v2436, %v2450
    %v2473 = vadd.f32 %v2437, %v2450
    %v2474 = vadd.f32 %v2438, %v2450
    %v2475 = vadd.f32 %v2439, %v2450
    %v2476 = vadd.f32 %v2440, %v2450
    %v2477 = vadd.f32 %v2441, %v2450
    %v2478 = vadd.f32 %v2442, %v2450
    %v2479 = vadd.f32 %v2443, %v2450
    %v2480 = vadd.f32 %v2444, %v2450
    %v2481 = vadd.f32 %v2445, %v2450
    %v2482 = vadd.f32 %v2446, %v2450
    %2483 = vst [vmem:[#allocation8] sm:$0xff] %v2451
    %2484 = vst [vmem:[#allocation8 + $0x8] sm:$0xff] %v2452
    %2485 = vst [vmem:[#allocation8 + $0x10] sm:$0xff] %v2453
    %2486 = vst [vmem:[#allocation8 + $0x18] sm:$0xff] %v2454
    %2487 = vst [vmem:[#allocation8 + $0x20] sm:$0xff] %v2455
    %2488 = vst [vmem:[#allocation8 + $0x28] sm:$0xff] %v2456
    %2489 = vst [vmem:[#allocation8 + $0x30] sm:$0xff] %v2457
    %2490 = vst [vmem:[#allocation8 + $0x38] sm:$0xff] %v2458
    %2491 = vst [vmem:[#allocation8 + $0x40] sm:$0xff] %v2459
    %2492 = vst [vmem:[#allocation8 + $0x48] sm:$0xff] %v2460
    %2493 = vst [vmem:[#allocation8 + $0x50] sm:$0xff] %v2461
    %2494 = vst [vmem:[#allocation8 + $0x58] sm:$0xff] %v2462
    %2495 = vst [vmem:[#allocation8 + $0x60] sm:$0xff] %v2463
    %2496 = vst [vmem:[#allocation8 + $0x68] sm:$0xff] %v2464
    %2497 = vst [vmem:[#allocation8 + $0x70] sm:$0xff] %v2465
    %2498 = vst [vmem:[#allocation8 + $0x78] sm:$0xff] %v2466
    %2499 = vst [vmem:[#allocation8 + $0x80] sm:$0xff] %v2467
    %2500 = vst [vmem:[#allocation8 + $0x88] sm:$0xff] %v2468
    %2501 = vst [vmem:[#allocation8 + $0x90] sm:$0xff] %v2469
    %2502 = vst [vmem:[#allocation8 + $0x98] sm:$0xff] %v2470
    %2503 = vst [vmem:[#allocation8 + $0xa0] sm:$0xff] %v2471
    %2504 = vst [vmem:[#allocation8 + $0xa8] sm:$0xff] %v2472
    %2505 = vst [vmem:[#allocation8 + $0xb0] sm:$0xff] %v2473
    %2506 = vst [vmem:[#allocation8 + $0xb8] sm:$0xff] %v2474
    %2507 = vst [vmem:[#allocation8 + $0xc0] sm:$0xff] %v2475
    %2508 = vst [vmem:[#allocation8 + $0xc8] sm:$0xff] %v2476
    %2509 = vst [vmem:[#allocation8 + $0xd0] sm:$0xff] %v2477
    %2510 = vst [vmem:[#allocation8 + $0xd8] sm:$0xff] %v2478
    %2511 = vst [vmem:[#allocation8 + $0xe0] sm:$0xff] %v2479
    %2512 = vst [vmem:[#allocation8 + $0xe8] sm:$0xff] %v2480
    %2513 = vst [vmem:[#allocation8 + $0xf0] sm:$0xff] %v2481
    %2514 = vst [vmem:[#allocation8 + $0xf8] sm:$0xff] %v2482
    // Predicated region
    $region26: #{tpu_custom_call.1} parent=1 // pred_check
      _
    $region27: #{tpu_custom_call.1} parent=1 // pred_check_branch
      %2516 = sbr.rel (0) target = $region29
    $region28: #{tpu_custom_call.1} parent=1 // pred_region
      %s2518 = ssub.s32 4096, 4096
      %2519 = vsyncadd [#allocation4], %s2518
      %s2520 = sshll.u32 [#allocation8], 4
      %s2521 = int_to_ptr.vmem [resolvable:$true] %s2520
      %2526 = dma.vmem_to_hbm [thread:$0]  %s2521, 4096, %s3, [#allocation4], 128, 128, 8
    $region29: #{tpu_custom_call.1} parent=1 // pred_fallthru
      _
    // Predicated region
    $region30: #{tpu_custom_call.1} parent=1 // pred_check
      _
    $region31: #{tpu_custom_call.1} parent=1 // pred_check_branch
      %2528 = sbr.rel (0) target = $region33
    $region32: #{tpu_custom_call.1} parent=1 // pred_region
      %2529 = dma.done [#allocation4], 4096
    $region33: #{tpu_custom_call.1} parent=1 // pred_fallthru
      _
    %2530 = vsyncpa [#allocation3], 1
    %2531 = vsyncpa [#allocation6], 1
    %2532 = vsyncpa [#allocation4], 1

</llo_original>
